<compile_context>
chip_gen: v7x
topology: tpu7x:2x2x1
jax: 0.10.0
libtpu: 0.0.40
codegen_flags: <defaults>
</compile_context>

<pallas_src>
import jax
import jax.numpy as jnp
import numpy as np
from jax.experimental import pallas as pl
from jax.experimental.pallas import tpu as pltpu


def _lstm_chunk_kernel(gx_ref, whh_ref, h_out_ref, h_sc, c_sc):
    # gx_ref:    (Tc*B, 4*Hp) f32   precomputed x-projection + bias, rows = t*B + b
    # whh_ref:   (Hp, 4*Hp)   bf16  recurrent weights (right-multiply form, padded)
    # h_out_ref: (Tc*B, Hp)   f32   per-timestep hidden states (sublane/lane dense)
    chunk = pl.program_id(0)

    @pl.when(chunk == 0)
    def _():
        h_sc[...] = jnp.zeros_like(h_sc)
        c_sc[...] = jnp.zeros_like(c_sc)

    B, Hp = h_sc.shape
    Tc = gx_ref.shape[0] // B

    def step(t, carry):
        row = t * B
        h_prev = h_sc[...]
        c_prev = c_sc[...]
        # gates = gates_x[t] + h_{t-1} @ W_hh^T   -> (B, 4*Hp)
        # Note: whh_ref is read inside the dot (not hoisted) so the (128,512)
        # RHS is streamed from VMEM by the MXU instead of living in vregs.
        gates = gx_ref[pl.ds(row, B), :] + jnp.dot(
            h_prev.astype(jnp.bfloat16), whh_ref[...],
            preferred_element_type=jnp.float32)

        # PyTorch LSTM gate ordering: i, f, g, o (each slice lane-aligned).
        # sigmoid(x) == 0.5 * tanh(0.5*x) + 0.5  (single EUP push per gate).
        i_g = 0.5 * jnp.tanh(0.5 * gates[:, 0:Hp]) + 0.5
        f_g = 0.5 * jnp.tanh(0.5 * gates[:, Hp:2 * Hp]) + 0.5
        g_g = jnp.tanh(gates[:, 2 * Hp:3 * Hp])
        o_g = 0.5 * jnp.tanh(0.5 * gates[:, 3 * Hp:4 * Hp]) + 0.5

        c_new = f_g * c_prev + i_g * g_g
        h_new = o_g * jnp.tanh(c_new)

        c_sc[...] = c_new
        h_sc[...] = h_new
        h_out_ref[pl.ds(row, B), :] = h_new
        return carry

    jax.lax.fori_loop(0, Tc, step, 0, unroll=True)


def rnn_buzzer_forward(X, w_ih, w_hh, b_ih, b_hh, w_out, b_out, *, time_chunk=32):
    """X: (B, T, n_input) float32. Weights use PyTorch shapes:
         w_ih (4H, I), w_hh (4H, H), b_ih (4H,), b_hh (4H,),
         w_out (O, H), b_out (O,).
       Returns logits of shape (B*T, O), matching RNNBuzzer.forward
       (row order b*T + t, i.e. lstm_out.view(-1, H) @ W_out^T + b_out)."""
    B, T, I = X.shape
    H = w_hh.shape[1]
    O = w_out.shape[0]
    Hp = ((H + 127) // 128) * 128            # lane-align hidden width

    Tc = min(time_chunk, T)
    n_chunks = pl.cdiv(T, Tc)
    T_pad = n_chunks * Tc

    f32 = jnp.float32
    wih = jnp.asarray(w_ih, f32)             # (4H, I)
    whh = jnp.asarray(w_hh, f32)             # (4H, H)
    bias = jnp.asarray(b_ih, f32) + jnp.asarray(b_hh, f32)   # (4H,)

    # --- Zero-padded, per-gate, right-multiply weight layout -----------------
    # Padded columns/rows/bias lanes are zero so padded h/c lanes remain 0.
    wih_g = wih.reshape(4, H, I)
    whh_g = whh.reshape(4, H, H)
    b_g = bias.reshape(4, H)

    wih_p = jnp.zeros((4, Hp, I), f32).at[:, :H, :].set(wih_g)
    whh_p = jnp.zeros((4, Hp, Hp), f32).at[:, :H, :H].set(whh_g)
    b_p = jnp.zeros((4, Hp), f32).at[:, :H].set(b_g)

    wih_t = jnp.transpose(wih_p, (2, 0, 1)).reshape(I, 4 * Hp)   # (I, 4*Hp) f32
    whh_t = jnp.transpose(whh_p, (2, 0, 1)).reshape(Hp, 4 * Hp)  # (Hp, 4*Hp)
    whh_t = whh_t.astype(jnp.bfloat16)                           # bf16 MXU operand
    b_flat = b_p.reshape(4 * Hp)                                 # (4*Hp,)

    # --- Hoisted input projection: transpose the narrow X first, then one big
    # (T*B, I) x (I, 4*Hp) matmul. Rows are time-major: row = t*B + b. --------
    x_tb = jnp.transpose(jnp.asarray(X, f32), (1, 0, 2)).reshape(T * B, I)
    gx = x_tb @ wih_t + b_flat                                   # (T*B, 4*Hp)
    if T_pad != T:
        # Tail-padded timesteps only corrupt h/c scratch AFTER t >= T; the
        # padded output rows are discarded below (we never return (h_n, c_n)).
        gx = jnp.pad(gx, ((0, (T_pad - T) * B), (0, 0)))

    # --- Sequential recurrence kernel (only h @ W_hh^T + gate nonlinearity) --
    h_out = pl.pallas_call(
        _lstm_chunk_kernel,
        out_shape=jax.ShapeDtypeStruct((T_pad * B, Hp), f32),
        grid_spec=pltpu.PrefetchScalarGridSpec(
            num_scalar_prefetch=0,
            grid=(n_chunks,),
            in_specs=[
                pl.BlockSpec((Tc * B, 4 * Hp), lambda c: (c, 0)),  # gates_x chunk
                pl.BlockSpec((Hp, 4 * Hp), lambda c: (0, 0)),      # W_hh^T (bf16)
            ],
            out_specs=pl.BlockSpec((Tc * B, Hp), lambda c: (c, 0)),
            scratch_shapes=[
                pltpu.VMEM((B, Hp), f32),   # h state (persists across chunks)
                pltpu.VMEM((B, Hp), f32),   # c state
            ],
        ),
        compiler_params=pltpu.CompilerParams(
            dimension_semantics=("arbitrary",),   # time chunks are sequential
            vmem_limit_bytes=32 * 1024 * 1024,
        ),
    )(gx, whh_t)

    # --- Output head as one big XLA matmul, still in (T, B) row order; only
    # the tiny (T, B, O) logits tensor gets transposed back to batch-major. ---
    h_seq = h_out[:T * B, :H]                                        # (T*B, H)
    logits_tb = h_seq @ jnp.asarray(w_out, f32).T + jnp.asarray(b_out, f32)
    logits = jnp.transpose(logits_tb.reshape(T, B, O), (1, 0, 2)).reshape(B * T, O)
    return logits


def _reference_forward(X, w_ih, w_hh, b_ih, b_hh, w_out, b_out):
    """Pure-JAX f32 reference replicating torch.nn.LSTM + Linear semantics."""
    B, T, I = X.shape
    H = w_hh.shape[1]
    wih_t, whh_t = w_ih.T, w_hh.T
    b = b_ih + b_hh

    def step(carry, x_t):
        h, c = carry
        gates = x_t @ wih_t + h @ whh_t + b
        i = jax.nn.sigmoid(gates[:, 0:H])
        f = jax.nn.sigmoid(gates[:, H:2 * H])
        g = jnp.tanh(gates[:, 2 * H:3 * H])
        o = jax.nn.sigmoid(gates[:, 3 * H:4 * H])
        c = f * c + i * g
        h = o * jnp.tanh(c)
        return (h, c), h

    h0 = jnp.zeros((B, H), jnp.float32)
    c0 = jnp.zeros((B, H), jnp.float32)
    _, hs = jax.lax.scan(step, (h0, c0), jnp.transpose(X, (1, 0, 2)))
    hs = jnp.transpose(hs, (1, 0, 2)).reshape(-1, H)
    return hs @ w_out.T + b_out


if __name__ == "__main__":
    n_input, n_hidden, n_output = 10, 50, 2
    key = jax.random.PRNGKey(0)
    ks = jax.random.split(key, 7)
    scale = 1.0 / np.sqrt(n_hidden)

    w_ih = jax.random.uniform(ks[1], (4 * n_hidden, n_input), jnp.float32, -scale, scale)
    w_hh = jax.random.uniform(ks[2], (4 * n_hidden, n_hidden), jnp.float32, -scale, scale)
    b_ih = jax.random.uniform(ks[3], (4 * n_hidden,), jnp.float32, -scale, scale)
    b_hh = jax.random.uniform(ks[4], (4 * n_hidden,), jnp.float32, -scale, scale)
    w_out = jax.random.uniform(ks[5], (n_output, n_hidden), jnp.float32, -scale, scale)
    b_out = jax.random.uniform(ks[6], (n_output,), jnp.float32, -scale, scale)

    # bf16 MXU operands in the recurrence -> relaxed tolerance vs f32 reference.
    TOL = 2e-2

    # Case 1: small spec-sized input (B=2, T=8) — single chunk, no padding.
    B, T = 2, 8
    X = jax.random.normal(ks[0], (B, T, n_input), jnp.float32)
    logits = jax.block_until_ready(
        rnn_buzzer_forward(X, w_ih, w_hh, b_ih, b_hh, w_out, b_out))
    ref = _reference_forward(X, w_ih, w_hh, b_ih, b_hh, w_out, b_out)
    assert logits.shape == (B * T, n_output), logits.shape
    np.testing.assert_allclose(np.asarray(logits), np.asarray(ref),
                               rtol=TOL, atol=TOL)

    # Case 2: longer sequence (B=2, T=45) — exercises multiple time chunks,
    # cross-chunk h/c scratch persistence, and tail-timestep padding.
    B2, T2 = 2, 45
    X2 = jax.random.normal(jax.random.PRNGKey(1), (B2, T2, n_input), jnp.float32)
    logits2 = jax.block_until_ready(
        rnn_buzzer_forward(X2, w_ih, w_hh, b_ih, b_hh, w_out, b_out))
    ref2 = _reference_forward(X2, w_ih, w_hh, b_ih, b_hh, w_out, b_out)
    assert logits2.shape == (B2 * T2, n_output), logits2.shape
    np.testing.assert_allclose(np.asarray(logits2), np.asarray(ref2),
                               rtol=TOL, atol=TOL)

    print("KERNEL_OK")
</pallas_src>

<mosaic_0001>
module attributes {stable_mosaic.version = 11 : i64} {
  func.func @_lstm_chunk_kernel(%arg0: i32, %arg1: memref<16x512xf32, #tpu.memory_space<vmem>>, %arg2: memref<128x512xbf16, #tpu.memory_space<vmem>>, %arg3: memref<16x128xf32, #tpu.memory_space<vmem>>, %arg4: memref<2x128xf32, #tpu.memory_space<vmem>>, %arg5: memref<2x128xf32, #tpu.memory_space<vmem>>) attributes {dimension_semantics = [#tpu.dimension_semantics<arbitrary>], iteration_bounds = array<i64: 1>, scalar_prefetch = 0 : i64, scratch_operands = 2 : i64, tpu.core_type = #tpu.core_type<tc>, window_params = [{transform_indices = @transform_0, window_bounds = array<i64: 16, 512>}, {pipeline_mode = #tpu.pipeline_mode<synchronous>, transform_indices = @transform_1, window_bounds = array<i64: 128, 512>}, {transform_indices = @transform_2, window_bounds = array<i64: 16, 128>}]} {
    %c0_i32 = arith.constant 0 : i32
    %0 = arith.cmpi eq, %arg0, %c0_i32 : i32
    %1 = arith.extui %0 : i1 to i32
    %c0_i32_0 = arith.constant 0 : i32
    %2 = arith.cmpi ne, %1, %c0_i32_0 : i32
    scf.if %2 {
      %cst_184 = arith.constant 0.000000e+00 : f32
      %355 = vector.broadcast %cst_184 : f32 to vector<2x128xf32>
      %c0_185 = arith.constant 0 : index
      %c0_186 = arith.constant 0 : index
      %356 = vector.load %arg4[%c0_185, %c0_186] : memref<2x128xf32, #tpu.memory_space<vmem>>, vector<2x128xf32>
      tpu.vector_store %arg4[%c0_185, %c0_186], %355 {strides = array<i32>} : memref<2x128xf32, #tpu.memory_space<vmem>>, vector<2x128xf32>,
      %cst_187 = arith.constant 0.000000e+00 : f32
      %357 = vector.broadcast %cst_187 : f32 to vector<2x128xf32>
      %c0_188 = arith.constant 0 : index
      %c0_189 = arith.constant 0 : index
      %358 = vector.load %arg5[%c0_188, %c0_189] : memref<2x128xf32, #tpu.memory_space<vmem>>, vector<2x128xf32>
      tpu.vector_store %arg5[%c0_188, %c0_189], %357 {strides = array<i32>} : memref<2x128xf32, #tpu.memory_space<vmem>>, vector<2x128xf32>,
    } else {
    }
    %c0_i32_1 = arith.constant 0 : i32
    %c2_i32 = arith.constant 2 : i32
    %3 = arith.muli %c0_i32_1, %c2_i32 : i32
    %c0 = arith.constant 0 : index
    %c0_2 = arith.constant 0 : index
    %4 = vector.load %arg4[%c0, %c0_2] : memref<2x128xf32, #tpu.memory_space<vmem>>, vector<2x128xf32>
    %c0_3 = arith.constant 0 : index
    %c0_4 = arith.constant 0 : index
    %5 = vector.load %arg5[%c0_3, %c0_4] : memref<2x128xf32, #tpu.memory_space<vmem>>, vector<2x128xf32>
    %6 = arith.index_cast %3 : i32 to index
    %c0_5 = arith.constant 0 : index
    %7 = vector.load %arg1[%6, %c0_5] : memref<16x512xf32, #tpu.memory_space<vmem>>, vector<2x512xf32>
    %8 = arith.truncf %4 : vector<2x128xf32> to vector<2x128xbf16>
    %c0_6 = arith.constant 0 : index
    %c0_7 = arith.constant 0 : index
    %9 = vector.load %arg2[%c0_6, %c0_7] : memref<128x512xbf16, #tpu.memory_space<vmem>>, vector<128x512xbf16>
    %cst = arith.constant dense<0.000000e+00> : vector<2x512xf32>
    %10 = tpu.matmul %8, %9, %cst {dimension_numbers = #tpu.dot_dimension_numbers<[1], [0], [0], [1], [0, 0, 1, 1], [], []>} : vector<2x128xbf16>, vector<128x512xbf16>, vector<2x512xf32> -> vector<2x512xf32>
    %11 = arith.addf %7, %10 : vector<2x512xf32>
    %12 = vector.extract_strided_slice %11 {offsets = [0, 0], sizes = [2, 128], strides = [1, 1]} : vector<2x512xf32> to vector<2x128xf32>
    %cst_8 = arith.constant 5.000000e-01 : f32
    %13 = vector.broadcast %cst_8 : f32 to vector<2x128xf32>
    %14 = arith.mulf %13, %12 : vector<2x128xf32>
    %15 = math.tanh %14 : vector<2x128xf32>
    %cst_9 = arith.constant 5.000000e-01 : f32
    %16 = vector.broadcast %cst_9 : f32 to vector<2x128xf32>
    %17 = arith.mulf %16, %15 : vector<2x128xf32>
    %cst_10 = arith.constant 5.000000e-01 : f32
    %18 = vector.broadcast %cst_10 : f32 to vector<2x128xf32>
    %19 = arith.addf %17, %18 : vector<2x128xf32>
    %20 = vector.extract_strided_slice %11 {offsets = [0, 128], sizes = [2, 128], strides = [1, 1]} : vector<2x512xf32> to vector<2x128xf32>
    %cst_11 = arith.constant 5.000000e-01 : f32
    %21 = vector.broadcast %cst_11 : f32 to vector<2x128xf32>
    %22 = arith.mulf %21, %20 : vector<2x128xf32>
    %23 = math.tanh %22 : vector<2x128xf32>
    %cst_12 = arith.constant 5.000000e-01 : f32
    %24 = vector.broadcast %cst_12 : f32 to vector<2x128xf32>
    %25 = arith.mulf %24, %23 : vector<2x128xf32>
    %cst_13 = arith.constant 5.000000e-01 : f32
    %26 = vector.broadcast %cst_13 : f32 to vector<2x128xf32>
    %27 = arith.addf %25, %26 : vector<2x128xf32>
    %28 = vector.extract_strided_slice %11 {offsets = [0, 256], sizes = [2, 128], strides = [1, 1]} : vector<2x512xf32> to vector<2x128xf32>
    %29 = math.tanh %28 : vector<2x128xf32>
    %30 = vector.extract_strided_slice %11 {offsets = [0, 384], sizes = [2, 128], strides = [1, 1]} : vector<2x512xf32> to vector<2x128xf32>
    %cst_14 = arith.constant 5.000000e-01 : f32
    %31 = vector.broadcast %cst_14 : f32 to vector<2x128xf32>
    %32 = arith.mulf %31, %30 : vector<2x128xf32>
    %33 = math.tanh %32 : vector<2x128xf32>
    %cst_15 = arith.constant 5.000000e-01 : f32
    %34 = vector.broadcast %cst_15 : f32 to vector<2x128xf32>
    %35 = arith.mulf %34, %33 : vector<2x128xf32>
    %cst_16 = arith.constant 5.000000e-01 : f32
    %36 = vector.broadcast %cst_16 : f32 to vector<2x128xf32>
    %37 = arith.addf %35, %36 : vector<2x128xf32>
    %38 = arith.mulf %27, %5 : vector<2x128xf32>
    %39 = arith.mulf %19, %29 : vector<2x128xf32>
    %40 = arith.addf %38, %39 : vector<2x128xf32>
    %41 = math.tanh %40 : vector<2x128xf32>
    %42 = arith.mulf %37, %41 : vector<2x128xf32>
    %c0_17 = arith.constant 0 : index
    %c0_18 = arith.constant 0 : index
    %43 = vector.load %arg5[%c0_17, %c0_18] : memref<2x128xf32, #tpu.memory_space<vmem>>, vector<2x128xf32>
    tpu.vector_store %arg5[%c0_17, %c0_18], %40 {strides = array<i32>} : memref<2x128xf32, #tpu.memory_space<vmem>>, vector<2x128xf32>,
    %c0_19 = arith.constant 0 : index
    %c0_20 = arith.constant 0 : index
    %44 = vector.load %arg4[%c0_19, %c0_20] : memref<2x128xf32, #tpu.memory_space<vmem>>, vector<2x128xf32>
    tpu.vector_store %arg4[%c0_19, %c0_20], %42 {strides = array<i32>} : memref<2x128xf32, #tpu.memory_space<vmem>>, vector<2x128xf32>,
    %45 = arith.index_cast %3 : i32 to index
    %c0_21 = arith.constant 0 : index
    %46 = vector.load %arg3[%45, %c0_21] : memref<16x128xf32, #tpu.memory_space<vmem>>, vector<2x128xf32>
    tpu.vector_store %arg3[%45, %c0_21], %42 {strides = array<i32>} : memref<16x128xf32, #tpu.memory_space<vmem>>, vector<2x128xf32>,
    %c1_i32 = arith.constant 1 : i32
    %c2_i32_22 = arith.constant 2 : i32
    %47 = arith.muli %c1_i32, %c2_i32_22 : i32
    %c0_23 = arith.constant 0 : index
    %c0_24 = arith.constant 0 : index
    %48 = vector.load %arg4[%c0_23, %c0_24] : memref<2x128xf32, #tpu.memory_space<vmem>>, vector<2x128xf32>
    %c0_25 = arith.constant 0 : index
    %c0_26 = arith.constant 0 : index
    %49 = vector.load %arg5[%c0_25, %c0_26] : memref<2x128xf32, #tpu.memory_space<vmem>>, vector<2x128xf32>
    %50 = arith.index_cast %47 : i32 to index
    %c0_27 = arith.constant 0 : index
    %51 = vector.load %arg1[%50, %c0_27] : memref<16x512xf32, #tpu.memory_space<vmem>>, vector<2x512xf32>
    %52 = arith.truncf %48 : vector<2x128xf32> to vector<2x128xbf16>
    %c0_28 = arith.constant 0 : index
    %c0_29 = arith.constant 0 : index
    %53 = vector.load %arg2[%c0_28, %c0_29] : memref<128x512xbf16, #tpu.memory_space<vmem>>, vector<128x512xbf16>
    %cst_30 = arith.constant dense<0.000000e+00> : vector<2x512xf32>
    %54 = tpu.matmul %52, %53, %cst_30 {dimension_numbers = #tpu.dot_dimension_numbers<[1], [0], [0], [1], [0, 0, 1, 1], [], []>} : vector<2x128xbf16>, vector<128x512xbf16>, vector<2x512xf32> -> vector<2x512xf32>
    %55 = arith.addf %51, %54 : vector<2x512xf32>
    %56 = vector.extract_strided_slice %55 {offsets = [0, 0], sizes = [2, 128], strides = [1, 1]} : vector<2x512xf32> to vector<2x128xf32>
    %cst_31 = arith.constant 5.000000e-01 : f32
    %57 = vector.broadcast %cst_31 : f32 to vector<2x128xf32>
    %58 = arith.mulf %57, %56 : vector<2x128xf32>
    %59 = math.tanh %58 : vector<2x128xf32>
    %cst_32 = arith.constant 5.000000e-01 : f32
    %60 = vector.broadcast %cst_32 : f32 to vector<2x128xf32>
    %61 = arith.mulf %60, %59 : vector<2x128xf32>
    %cst_33 = arith.constant 5.000000e-01 : f32
    %62 = vector.broadcast %cst_33 : f32 to vector<2x128xf32>
    %63 = arith.addf %61, %62 : vector<2x128xf32>
    %64 = vector.extract_strided_slice %55 {offsets = [0, 128], sizes = [2, 128], strides = [1, 1]} : vector<2x512xf32> to vector<2x128xf32>
    %cst_34 = arith.constant 5.000000e-01 : f32
    %65 = vector.broadcast %cst_34 : f32 to vector<2x128xf32>
    %66 = arith.mulf %65, %64 : vector<2x128xf32>
    %67 = math.tanh %66 : vector<2x128xf32>
    %cst_35 = arith.constant 5.000000e-01 : f32
    %68 = vector.broadcast %cst_35 : f32 to vector<2x128xf32>
    %69 = arith.mulf %68, %67 : vector<2x128xf32>
    %cst_36 = arith.constant 5.000000e-01 : f32
    %70 = vector.broadcast %cst_36 : f32 to vector<2x128xf32>
    %71 = arith.addf %69, %70 : vector<2x128xf32>
    %72 = vector.extract_strided_slice %55 {offsets = [0, 256], sizes = [2, 128], strides = [1, 1]} : vector<2x512xf32> to vector<2x128xf32>
    %73 = math.tanh %72 : vector<2x128xf32>
    %74 = vector.extract_strided_slice %55 {offsets = [0, 384], sizes = [2, 128], strides = [1, 1]} : vector<2x512xf32> to vector<2x128xf32>
    %cst_37 = arith.constant 5.000000e-01 : f32
    %75 = vector.broadcast %cst_37 : f32 to vector<2x128xf32>
    %76 = arith.mulf %75, %74 : vector<2x128xf32>
    %77 = math.tanh %76 : vector<2x128xf32>
    %cst_38 = arith.constant 5.000000e-01 : f32
    %78 = vector.broadcast %cst_38 : f32 to vector<2x128xf32>
    %79 = arith.mulf %78, %77 : vector<2x128xf32>
    %cst_39 = arith.constant 5.000000e-01 : f32
    %80 = vector.broadcast %cst_39 : f32 to vector<2x128xf32>
    %81 = arith.addf %79, %80 : vector<2x128xf32>
    %82 = arith.mulf %71, %49 : vector<2x128xf32>
    %83 = arith.mulf %63, %73 : vector<2x128xf32>
    %84 = arith.addf %82, %83 : vector<2x128xf32>
    %85 = math.tanh %84 : vector<2x128xf32>
    %86 = arith.mulf %81, %85 : vector<2x128xf32>
    %c0_40 = arith.constant 0 : index
    %c0_41 = arith.constant 0 : index
    %87 = vector.load %arg5[%c0_40, %c0_41] : memref<2x128xf32, #tpu.memory_space<vmem>>, vector<2x128xf32>
    tpu.vector_store %arg5[%c0_40, %c0_41], %84 {strides = array<i32>} : memref<2x128xf32, #tpu.memory_space<vmem>>, vector<2x128xf32>,
    %c0_42 = arith.constant 0 : index
    %c0_43 = arith.constant 0 : index
    %88 = vector.load %arg4[%c0_42, %c0_43] : memref<2x128xf32, #tpu.memory_space<vmem>>, vector<2x128xf32>
    tpu.vector_store %arg4[%c0_42, %c0_43], %86 {strides = array<i32>} : memref<2x128xf32, #tpu.memory_space<vmem>>, vector<2x128xf32>,
    %89 = arith.index_cast %47 : i32 to index
    %c0_44 = arith.constant 0 : index
    %90 = vector.load %arg3[%89, %c0_44] : memref<16x128xf32, #tpu.memory_space<vmem>>, vector<2x128xf32>
    tpu.vector_store %arg3[%89, %c0_44], %86 {strides = array<i32>} : memref<16x128xf32, #tpu.memory_space<vmem>>, vector<2x128xf32>,
    %c2_i32_45 = arith.constant 2 : i32
    %c2_i32_46 = arith.constant 2 : i32
    %91 = arith.muli %c2_i32_45, %c2_i32_46 : i32
    %c0_47 = arith.constant 0 : index
    %c0_48 = arith.constant 0 : index
    %92 = vector.load %arg4[%c0_47, %c0_48] : memref<2x128xf32, #tpu.memory_space<vmem>>, vector<2x128xf32>
    %c0_49 = arith.constant 0 : index
    %c0_50 = arith.constant 0 : index
    %93 = vector.load %arg5[%c0_49, %c0_50] : memref<2x128xf32, #tpu.memory_space<vmem>>, vector<2x128xf32>
    %94 = arith.index_cast %91 : i32 to index
    %c0_51 = arith.constant 0 : index
    %95 = vector.load %arg1[%94, %c0_51] : memref<16x512xf32, #tpu.memory_space<vmem>>, vector<2x512xf32>
    %96 = arith.truncf %92 : vector<2x128xf32> to vector<2x128xbf16>
    %c0_52 = arith.constant 0 : index
    %c0_53 = arith.constant 0 : index
    %97 = vector.load %arg2[%c0_52, %c0_53] : memref<128x512xbf16, #tpu.memory_space<vmem>>, vector<128x512xbf16>
    %cst_54 = arith.constant dense<0.000000e+00> : vector<2x512xf32>
    %98 = tpu.matmul %96, %97, %cst_54 {dimension_numbers = #tpu.dot_dimension_numbers<[1], [0], [0], [1], [0, 0, 1, 1], [], []>} : vector<2x128xbf16>, vector<128x512xbf16>, vector<2x512xf32> -> vector<2x512xf32>
    %99 = arith.addf %95, %98 : vector<2x512xf32>
    %100 = vector.extract_strided_slice %99 {offsets = [0, 0], sizes = [2, 128], strides = [1, 1]} : vector<2x512xf32> to vector<2x128xf32>
    %cst_55 = arith.constant 5.000000e-01 : f32
    %101 = vector.broadcast %cst_55 : f32 to vector<2x128xf32>
    %102 = arith.mulf %101, %100 : vector<2x128xf32>
    %103 = math.tanh %102 : vector<2x128xf32>
    %cst_56 = arith.constant 5.000000e-01 : f32
    %104 = vector.broadcast %cst_56 : f32 to vector<2x128xf32>
    %105 = arith.mulf %104, %103 : vector<2x128xf32>
    %cst_57 = arith.constant 5.000000e-01 : f32
    %106 = vector.broadcast %cst_57 : f32 to vector<2x128xf32>
    %107 = arith.addf %105, %106 : vector<2x128xf32>
    %108 = vector.extract_strided_slice %99 {offsets = [0, 128], sizes = [2, 128], strides = [1, 1]} : vector<2x512xf32> to vector<2x128xf32>
    %cst_58 = arith.constant 5.000000e-01 : f32
    %109 = vector.broadcast %cst_58 : f32 to vector<2x128xf32>
    %110 = arith.mulf %109, %108 : vector<2x128xf32>
    %111 = math.tanh %110 : vector<2x128xf32>
    %cst_59 = arith.constant 5.000000e-01 : f32
    %112 = vector.broadcast %cst_59 : f32 to vector<2x128xf32>
    %113 = arith.mulf %112, %111 : vector<2x128xf32>
    %cst_60 = arith.constant 5.000000e-01 : f32
    %114 = vector.broadcast %cst_60 : f32 to vector<2x128xf32>
    %115 = arith.addf %113, %114 : vector<2x128xf32>
    %116 = vector.extract_strided_slice %99 {offsets = [0, 256], sizes = [2, 128], strides = [1, 1]} : vector<2x512xf32> to vector<2x128xf32>
    %117 = math.tanh %116 : vector<2x128xf32>
    %118 = vector.extract_strided_slice %99 {offsets = [0, 384], sizes = [2, 128], strides = [1, 1]} : vector<2x512xf32> to vector<2x128xf32>
    %cst_61 = arith.constant 5.000000e-01 : f32
    %119 = vector.broadcast %cst_61 : f32 to vector<2x128xf32>
    %120 = arith.mulf %119, %118 : vector<2x128xf32>
    %121 = math.tanh %120 : vector<2x128xf32>
    %cst_62 = arith.constant 5.000000e-01 : f32
    %122 = vector.broadcast %cst_62 : f32 to vector<2x128xf32>
    %123 = arith.mulf %122, %121 : vector<2x128xf32>
    %cst_63 = arith.constant 5.000000e-01 : f32
    %124 = vector.broadcast %cst_63 : f32 to vector<2x128xf32>
    %125 = arith.addf %123, %124 : vector<2x128xf32>
    %126 = arith.mulf %115, %93 : vector<2x128xf32>
    %127 = arith.mulf %107, %117 : vector<2x128xf32>
    %128 = arith.addf %126, %127 : vector<2x128xf32>
    %129 = math.tanh %128 : vector<2x128xf32>
    %130 = arith.mulf %125, %129 : vector<2x128xf32>
    %c0_64 = arith.constant 0 : index
    %c0_65 = arith.constant 0 : index
    %131 = vector.load %arg5[%c0_64, %c0_65] : memref<2x128xf32, #tpu.memory_space<vmem>>, vector<2x128xf32>
    tpu.vector_store %arg5[%c0_64, %c0_65], %128 {strides = array<i32>} : memref<2x128xf32, #tpu.memory_space<vmem>>, vector<2x128xf32>,
    %c0_66 = arith.constant 0 : index
    %c0_67 = arith.constant 0 : index
    %132 = vector.load %arg4[%c0_66, %c0_67] : memref<2x128xf32, #tpu.memory_space<vmem>>, vector<2x128xf32>
    tpu.vector_store %arg4[%c0_66, %c0_67], %130 {strides = array<i32>} : memref<2x128xf32, #tpu.memory_space<vmem>>, vector<2x128xf32>,
    %133 = arith.index_cast %91 : i32 to index
    %c0_68 = arith.constant 0 : index
    %134 = vector.load %arg3[%133, %c0_68] : memref<16x128xf32, #tpu.memory_space<vmem>>, vector<2x128xf32>
    tpu.vector_store %arg3[%133, %c0_68], %130 {strides = array<i32>} : memref<16x128xf32, #tpu.memory_space<vmem>>, vector<2x128xf32>,
    %c3_i32 = arith.constant 3 : i32
    %c2_i32_69 = arith.constant 2 : i32
    %135 = arith.muli %c3_i32, %c2_i32_69 : i32
    %c0_70 = arith.constant 0 : index
    %c0_71 = arith.constant 0 : index
    %136 = vector.load %arg4[%c0_70, %c0_71] : memref<2x128xf32, #tpu.memory_space<vmem>>, vector<2x128xf32>
    %c0_72 = arith.constant 0 : index
    %c0_73 = arith.constant 0 : index
    %137 = vector.load %arg5[%c0_72, %c0_73] : memref<2x128xf32, #tpu.memory_space<vmem>>, vector<2x128xf32>
    %138 = arith.index_cast %135 : i32 to index
    %c0_74 = arith.constant 0 : index
    %139 = vector.load %arg1[%138, %c0_74] : memref<16x512xf32, #tpu.memory_space<vmem>>, vector<2x512xf32>
    %140 = arith.truncf %136 : vector<2x128xf32> to vector<2x128xbf16>
    %c0_75 = arith.constant 0 : index
    %c0_76 = arith.constant 0 : index
    %141 = vector.load %arg2[%c0_75, %c0_76] : memref<128x512xbf16, #tpu.memory_space<vmem>>, vector<128x512xbf16>
    %cst_77 = arith.constant dense<0.000000e+00> : vector<2x512xf32>
    %142 = tpu.matmul %140, %141, %cst_77 {dimension_numbers = #tpu.dot_dimension_numbers<[1], [0], [0], [1], [0, 0, 1, 1], [], []>} : vector<2x128xbf16>, vector<128x512xbf16>, vector<2x512xf32> -> vector<2x512xf32>
    %143 = arith.addf %139, %142 : vector<2x512xf32>
    %144 = vector.extract_strided_slice %143 {offsets = [0, 0], sizes = [2, 128], strides = [1, 1]} : vector<2x512xf32> to vector<2x128xf32>
    %cst_78 = arith.constant 5.000000e-01 : f32
    %145 = vector.broadcast %cst_78 : f32 to vector<2x128xf32>
    %146 = arith.mulf %145, %144 : vector<2x128xf32>
    %147 = math.tanh %146 : vector<2x128xf32>
    %cst_79 = arith.constant 5.000000e-01 : f32
    %148 = vector.broadcast %cst_79 : f32 to vector<2x128xf32>
    %149 = arith.mulf %148, %147 : vector<2x128xf32>
    %cst_80 = arith.constant 5.000000e-01 : f32
    %150 = vector.broadcast %cst_80 : f32 to vector<2x128xf32>
    %151 = arith.addf %149, %150 : vector<2x128xf32>
    %152 = vector.extract_strided_slice %143 {offsets = [0, 128], sizes = [2, 128], strides = [1, 1]} : vector<2x512xf32> to vector<2x128xf32>
    %cst_81 = arith.constant 5.000000e-01 : f32
    %153 = vector.broadcast %cst_81 : f32 to vector<2x128xf32>
    %154 = arith.mulf %153, %152 : vector<2x128xf32>
    %155 = math.tanh %154 : vector<2x128xf32>
    %cst_82 = arith.constant 5.000000e-01 : f32
    %156 = vector.broadcast %cst_82 : f32 to vector<2x128xf32>
    %157 = arith.mulf %156, %155 : vector<2x128xf32>
    %cst_83 = arith.constant 5.000000e-01 : f32
    %158 = vector.broadcast %cst_83 : f32 to vector<2x128xf32>
    %159 = arith.addf %157, %158 : vector<2x128xf32>
    %160 = vector.extract_strided_slice %143 {offsets = [0, 256], sizes = [2, 128], strides = [1, 1]} : vector<2x512xf32> to vector<2x128xf32>
    %161 = math.tanh %160 : vector<2x128xf32>
    %162 = vector.extract_strided_slice %143 {offsets = [0, 384], sizes = [2, 128], strides = [1, 1]} : vector<2x512xf32> to vector<2x128xf32>
    %cst_84 = arith.constant 5.000000e-01 : f32
    %163 = vector.broadcast %cst_84 : f32 to vector<2x128xf32>
    %164 = arith.mulf %163, %162 : vector<2x128xf32>
    %165 = math.tanh %164 : vector<2x128xf32>
    %cst_85 = arith.constant 5.000000e-01 : f32
    %166 = vector.broadcast %cst_85 : f32 to vector<2x128xf32>
    %167 = arith.mulf %166, %165 : vector<2x128xf32>
    %cst_86 = arith.constant 5.000000e-01 : f32
    %168 = vector.broadcast %cst_86 : f32 to vector<2x128xf32>
    %169 = arith.addf %167, %168 : vector<2x128xf32>
    %170 = arith.mulf %159, %137 : vector<2x128xf32>
    %171 = arith.mulf %151, %161 : vector<2x128xf32>
    %172 = arith.addf %170, %171 : vector<2x128xf32>
    %173 = math.tanh %172 : vector<2x128xf32>
    %174 = arith.mulf %169, %173 : vector<2x128xf32>
    %c0_87 = arith.constant 0 : index
    %c0_88 = arith.constant 0 : index
    %175 = vector.load %arg5[%c0_87, %c0_88] : memref<2x128xf32, #tpu.memory_space<vmem>>, vector<2x128xf32>
    tpu.vector_store %arg5[%c0_87, %c0_88], %172 {strides = array<i32>} : memref<2x128xf32, #tpu.memory_space<vmem>>, vector<2x128xf32>,
    %c0_89 = arith.constant 0 : index
    %c0_90 = arith.constant 0 : index
    %176 = vector.load %arg4[%c0_89, %c0_90] : memref<2x128xf32, #tpu.memory_space<vmem>>, vector<2x128xf32>
    tpu.vector_store %arg4[%c0_89, %c0_90], %174 {strides = array<i32>} : memref<2x128xf32, #tpu.memory_space<vmem>>, vector<2x128xf32>,
    %177 = arith.index_cast %135 : i32 to index
    %c0_91 = arith.constant 0 : index
    %178 = vector.load %arg3[%177, %c0_91] : memref<16x128xf32, #tpu.memory_space<vmem>>, vector<2x128xf32>
    tpu.vector_store %arg3[%177, %c0_91], %174 {strides = array<i32>} : memref<16x128xf32, #tpu.memory_space<vmem>>, vector<2x128xf32>,
    %c4_i32 = arith.constant 4 : i32
    %c2_i32_92 = arith.constant 2 : i32
    %179 = arith.muli %c4_i32, %c2_i32_92 : i32
    %c0_93 = arith.constant 0 : index
    %c0_94 = arith.constant 0 : index
    %180 = vector.load %arg4[%c0_93, %c0_94] : memref<2x128xf32, #tpu.memory_space<vmem>>, vector<2x128xf32>
    %c0_95 = arith.constant 0 : index
    %c0_96 = arith.constant 0 : index
    %181 = vector.load %arg5[%c0_95, %c0_96] : memref<2x128xf32, #tpu.memory_space<vmem>>, vector<2x128xf32>
    %182 = arith.index_cast %179 : i32 to index
    %c0_97 = arith.constant 0 : index
    %183 = vector.load %arg1[%182, %c0_97] : memref<16x512xf32, #tpu.memory_space<vmem>>, vector<2x512xf32>
    %184 = arith.truncf %180 : vector<2x128xf32> to vector<2x128xbf16>
    %c0_98 = arith.constant 0 : index
    %c0_99 = arith.constant 0 : index
    %185 = vector.load %arg2[%c0_98, %c0_99] : memref<128x512xbf16, #tpu.memory_space<vmem>>, vector<128x512xbf16>
    %cst_100 = arith.constant dense<0.000000e+00> : vector<2x512xf32>
    %186 = tpu.matmul %184, %185, %cst_100 {dimension_numbers = #tpu.dot_dimension_numbers<[1], [0], [0], [1], [0, 0, 1, 1], [], []>} : vector<2x128xbf16>, vector<128x512xbf16>, vector<2x512xf32> -> vector<2x512xf32>
    %187 = arith.addf %183, %186 : vector<2x512xf32>
    %188 = vector.extract_strided_slice %187 {offsets = [0, 0], sizes = [2, 128], strides = [1, 1]} : vector<2x512xf32> to vector<2x128xf32>
    %cst_101 = arith.constant 5.000000e-01 : f32
    %189 = vector.broadcast %cst_101 : f32 to vector<2x128xf32>
    %190 = arith.mulf %189, %188 : vector<2x128xf32>
    %191 = math.tanh %190 : vector<2x128xf32>
    %cst_102 = arith.constant 5.000000e-01 : f32
    %192 = vector.broadcast %cst_102 : f32 to vector<2x128xf32>
    %193 = arith.mulf %192, %191 : vector<2x128xf32>
    %cst_103 = arith.constant 5.000000e-01 : f32
    %194 = vector.broadcast %cst_103 : f32 to vector<2x128xf32>
    %195 = arith.addf %193, %194 : vector<2x128xf32>
    %196 = vector.extract_strided_slice %187 {offsets = [0, 128], sizes = [2, 128], strides = [1, 1]} : vector<2x512xf32> to vector<2x128xf32>
    %cst_104 = arith.constant 5.000000e-01 : f32
    %197 = vector.broadcast %cst_104 : f32 to vector<2x128xf32>
    %198 = arith.mulf %197, %196 : vector<2x128xf32>
    %199 = math.tanh %198 : vector<2x128xf32>
    %cst_105 = arith.constant 5.000000e-01 : f32
    %200 = vector.broadcast %cst_105 : f32 to vector<2x128xf32>
    %201 = arith.mulf %200, %199 : vector<2x128xf32>
    %cst_106 = arith.constant 5.000000e-01 : f32
    %202 = vector.broadcast %cst_106 : f32 to vector<2x128xf32>
    %203 = arith.addf %201, %202 : vector<2x128xf32>
    %204 = vector.extract_strided_slice %187 {offsets = [0, 256], sizes = [2, 128], strides = [1, 1]} : vector<2x512xf32> to vector<2x128xf32>
    %205 = math.tanh %204 : vector<2x128xf32>
    %206 = vector.extract_strided_slice %187 {offsets = [0, 384], sizes = [2, 128], strides = [1, 1]} : vector<2x512xf32> to vector<2x128xf32>
    %cst_107 = arith.constant 5.000000e-01 : f32
    %207 = vector.broadcast %cst_107 : f32 to vector<2x128xf32>
    %208 = arith.mulf %207, %206 : vector<2x128xf32>
    %209 = math.tanh %208 : vector<2x128xf32>
    %cst_108 = arith.constant 5.000000e-01 : f32
    %210 = vector.broadcast %cst_108 : f32 to vector<2x128xf32>
    %211 = arith.mulf %210, %209 : vector<2x128xf32>
    %cst_109 = arith.constant 5.000000e-01 : f32
    %212 = vector.broadcast %cst_109 : f32 to vector<2x128xf32>
    %213 = arith.addf %211, %212 : vector<2x128xf32>
    %214 = arith.mulf %203, %181 : vector<2x128xf32>
    %215 = arith.mulf %195, %205 : vector<2x128xf32>
    %216 = arith.addf %214, %215 : vector<2x128xf32>
    %217 = math.tanh %216 : vector<2x128xf32>
    %218 = arith.mulf %213, %217 : vector<2x128xf32>
    %c0_110 = arith.constant 0 : index
    %c0_111 = arith.constant 0 : index
    %219 = vector.load %arg5[%c0_110, %c0_111] : memref<2x128xf32, #tpu.memory_space<vmem>>, vector<2x128xf32>
    tpu.vector_store %arg5[%c0_110, %c0_111], %216 {strides = array<i32>} : memref<2x128xf32, #tpu.memory_space<vmem>>, vector<2x128xf32>,
    %c0_112 = arith.constant 0 : index
    %c0_113 = arith.constant 0 : index
    %220 = vector.load %arg4[%c0_112, %c0_113] : memref<2x128xf32, #tpu.memory_space<vmem>>, vector<2x128xf32>
    tpu.vector_store %arg4[%c0_112, %c0_113], %218 {strides = array<i32>} : memref<2x128xf32, #tpu.memory_space<vmem>>, vector<2x128xf32>,
    %221 = arith.index_cast %179 : i32 to index
    %c0_114 = arith.constant 0 : index
    %222 = vector.load %arg3[%221, %c0_114] : memref<16x128xf32, #tpu.memory_space<vmem>>, vector<2x128xf32>
    tpu.vector_store %arg3[%221, %c0_114], %218 {strides = array<i32>} : memref<16x128xf32, #tpu.memory_space<vmem>>, vector<2x128xf32>,
    %c5_i32 = arith.constant 5 : i32
    %c2_i32_115 = arith.constant 2 : i32
    %223 = arith.muli %c5_i32, %c2_i32_115 : i32
    %c0_116 = arith.constant 0 : index
    %c0_117 = arith.constant 0 : index
    %224 = vector.load %arg4[%c0_116, %c0_117] : memref<2x128xf32, #tpu.memory_space<vmem>>, vector<2x128xf32>
    %c0_118 = arith.constant 0 : index
    %c0_119 = arith.constant 0 : index
    %225 = vector.load %arg5[%c0_118, %c0_119] : memref<2x128xf32, #tpu.memory_space<vmem>>, vector<2x128xf32>
    %226 = arith.index_cast %223 : i32 to index
    %c0_120 = arith.constant 0 : index
    %227 = vector.load %arg1[%226, %c0_120] : memref<16x512xf32, #tpu.memory_space<vmem>>, vector<2x512xf32>
    %228 = arith.truncf %224 : vector<2x128xf32> to vector<2x128xbf16>
    %c0_121 = arith.constant 0 : index
    %c0_122 = arith.constant 0 : index
    %229 = vector.load %arg2[%c0_121, %c0_122] : memref<128x512xbf16, #tpu.memory_space<vmem>>, vector<128x512xbf16>
    %cst_123 = arith.constant dense<0.000000e+00> : vector<2x512xf32>
    %230 = tpu.matmul %228, %229, %cst_123 {dimension_numbers = #tpu.dot_dimension_numbers<[1], [0], [0], [1], [0, 0, 1, 1], [], []>} : vector<2x128xbf16>, vector<128x512xbf16>, vector<2x512xf32> -> vector<2x512xf32>
    %231 = arith.addf %227, %230 : vector<2x512xf32>
    %232 = vector.extract_strided_slice %231 {offsets = [0, 0], sizes = [2, 128], strides = [1, 1]} : vector<2x512xf32> to vector<2x128xf32>
    %cst_124 = arith.constant 5.000000e-01 : f32
    %233 = vector.broadcast %cst_124 : f32 to vector<2x128xf32>
    %234 = arith.mulf %233, %232 : vector<2x128xf32>
    %235 = math.tanh %234 : vector<2x128xf32>
    %cst_125 = arith.constant 5.000000e-01 : f32
    %236 = vector.broadcast %cst_125 : f32 to vector<2x128xf32>
    %237 = arith.mulf %236, %235 : vector<2x128xf32>
    %cst_126 = arith.constant 5.000000e-01 : f32
    %238 = vector.broadcast %cst_126 : f32 to vector<2x128xf32>
    %239 = arith.addf %237, %238 : vector<2x128xf32>
    %240 = vector.extract_strided_slice %231 {offsets = [0, 128], sizes = [2, 128], strides = [1, 1]} : vector<2x512xf32> to vector<2x128xf32>
    %cst_127 = arith.constant 5.000000e-01 : f32
    %241 = vector.broadcast %cst_127 : f32 to vector<2x128xf32>
    %242 = arith.mulf %241, %240 : vector<2x128xf32>
    %243 = math.tanh %242 : vector<2x128xf32>
    %cst_128 = arith.constant 5.000000e-01 : f32
    %244 = vector.broadcast %cst_128 : f32 to vector<2x128xf32>
    %245 = arith.mulf %244, %243 : vector<2x128xf32>
    %cst_129 = arith.constant 5.000000e-01 : f32
    %246 = vector.broadcast %cst_129 : f32 to vector<2x128xf32>
    %247 = arith.addf %245, %246 : vector<2x128xf32>
    %248 = vector.extract_strided_slice %231 {offsets = [0, 256], sizes = [2, 128], strides = [1, 1]} : vector<2x512xf32> to vector<2x128xf32>
    %249 = math.tanh %248 : vector<2x128xf32>
    %250 = vector.extract_strided_slice %231 {offsets = [0, 384], sizes = [2, 128], strides = [1, 1]} : vector<2x512xf32> to vector<2x128xf32>
    %cst_130 = arith.constant 5.000000e-01 : f32
    %251 = vector.broadcast %cst_130 : f32 to vector<2x128xf32>
    %252 = arith.mulf %251, %250 : vector<2x128xf32>
    %253 = math.tanh %252 : vector<2x128xf32>
    %cst_131 = arith.constant 5.000000e-01 : f32
    %254 = vector.broadcast %cst_131 : f32 to vector<2x128xf32>
    %255 = arith.mulf %254, %253 : vector<2x128xf32>
    %cst_132 = arith.constant 5.000000e-01 : f32
    %256 = vector.broadcast %cst_132 : f32 to vector<2x128xf32>
    %257 = arith.addf %255, %256 : vector<2x128xf32>
    %258 = arith.mulf %247, %225 : vector<2x128xf32>
    %259 = arith.mulf %239, %249 : vector<2x128xf32>
    %260 = arith.addf %258, %259 : vector<2x128xf32>
    %261 = math.tanh %260 : vector<2x128xf32>
    %262 = arith.mulf %257, %261 : vector<2x128xf32>
    %c0_133 = arith.constant 0 : index
    %c0_134 = arith.constant 0 : index
    %263 = vector.load %arg5[%c0_133, %c0_134] : memref<2x128xf32, #tpu.memory_space<vmem>>, vector<2x128xf32>
    tpu.vector_store %arg5[%c0_133, %c0_134], %260 {strides = array<i32>} : memref<2x128xf32, #tpu.memory_space<vmem>>, vector<2x128xf32>,
    %c0_135 = arith.constant 0 : index
    %c0_136 = arith.constant 0 : index
    %264 = vector.load %arg4[%c0_135, %c0_136] : memref<2x128xf32, #tpu.memory_space<vmem>>, vector<2x128xf32>
    tpu.vector_store %arg4[%c0_135, %c0_136], %262 {strides = array<i32>} : memref<2x128xf32, #tpu.memory_space<vmem>>, vector<2x128xf32>,
    %265 = arith.index_cast %223 : i32 to index
    %c0_137 = arith.constant 0 : index
    %266 = vector.load %arg3[%265, %c0_137] : memref<16x128xf32, #tpu.memory_space<vmem>>, vector<2x128xf32>
    tpu.vector_store %arg3[%265, %c0_137], %262 {strides = array<i32>} : memref<16x128xf32, #tpu.memory_space<vmem>>, vector<2x128xf32>,
    %c6_i32 = arith.constant 6 : i32
    %c2_i32_138 = arith.constant 2 : i32
    %267 = arith.muli %c6_i32, %c2_i32_138 : i32
    %c0_139 = arith.constant 0 : index
    %c0_140 = arith.constant 0 : index
    %268 = vector.load %arg4[%c0_139, %c0_140] : memref<2x128xf32, #tpu.memory_space<vmem>>, vector<2x128xf32>
    %c0_141 = arith.constant 0 : index
    %c0_142 = arith.constant 0 : index
    %269 = vector.load %arg5[%c0_141, %c0_142] : memref<2x128xf32, #tpu.memory_space<vmem>>, vector<2x128xf32>
    %270 = arith.index_cast %267 : i32 to index
    %c0_143 = arith.constant 0 : index
    %271 = vector.load %arg1[%270, %c0_143] : memref<16x512xf32, #tpu.memory_space<vmem>>, vector<2x512xf32>
    %272 = arith.truncf %268 : vector<2x128xf32> to vector<2x128xbf16>
    %c0_144 = arith.constant 0 : index
    %c0_145 = arith.constant 0 : index
    %273 = vector.load %arg2[%c0_144, %c0_145] : memref<128x512xbf16, #tpu.memory_space<vmem>>, vector<128x512xbf16>
    %cst_146 = arith.constant dense<0.000000e+00> : vector<2x512xf32>
    %274 = tpu.matmul %272, %273, %cst_146 {dimension_numbers = #tpu.dot_dimension_numbers<[1], [0], [0], [1], [0, 0, 1, 1], [], []>} : vector<2x128xbf16>, vector<128x512xbf16>, vector<2x512xf32> -> vector<2x512xf32>
    %275 = arith.addf %271, %274 : vector<2x512xf32>
    %276 = vector.extract_strided_slice %275 {offsets = [0, 0], sizes = [2, 128], strides = [1, 1]} : vector<2x512xf32> to vector<2x128xf32>
    %cst_147 = arith.constant 5.000000e-01 : f32
    %277 = vector.broadcast %cst_147 : f32 to vector<2x128xf32>
    %278 = arith.mulf %277, %276 : vector<2x128xf32>
    %279 = math.tanh %278 : vector<2x128xf32>
    %cst_148 = arith.constant 5.000000e-01 : f32
    %280 = vector.broadcast %cst_148 : f32 to vector<2x128xf32>
    %281 = arith.mulf %280, %279 : vector<2x128xf32>
    %cst_149 = arith.constant 5.000000e-01 : f32
    %282 = vector.broadcast %cst_149 : f32 to vector<2x128xf32>
    %283 = arith.addf %281, %282 : vector<2x128xf32>
    %284 = vector.extract_strided_slice %275 {offsets = [0, 128], sizes = [2, 128], strides = [1, 1]} : vector<2x512xf32> to vector<2x128xf32>
    %cst_150 = arith.constant 5.000000e-01 : f32
    %285 = vector.broadcast %cst_150 : f32 to vector<2x128xf32>
    %286 = arith.mulf %285, %284 : vector<2x128xf32>
    %287 = math.tanh %286 : vector<2x128xf32>
    %cst_151 = arith.constant 5.000000e-01 : f32
    %288 = vector.broadcast %cst_151 : f32 to vector<2x128xf32>
    %289 = arith.mulf %288, %287 : vector<2x128xf32>
    %cst_152 = arith.constant 5.000000e-01 : f32
    %290 = vector.broadcast %cst_152 : f32 to vector<2x128xf32>
    %291 = arith.addf %289, %290 : vector<2x128xf32>
    %292 = vector.extract_strided_slice %275 {offsets = [0, 256], sizes = [2, 128], strides = [1, 1]} : vector<2x512xf32> to vector<2x128xf32>
    %293 = math.tanh %292 : vector<2x128xf32>
    %294 = vector.extract_strided_slice %275 {offsets = [0, 384], sizes = [2, 128], strides = [1, 1]} : vector<2x512xf32> to vector<2x128xf32>
    %cst_153 = arith.constant 5.000000e-01 : f32
    %295 = vector.broadcast %cst_153 : f32 to vector<2x128xf32>
    %296 = arith.mulf %295, %294 : vector<2x128xf32>
    %297 = math.tanh %296 : vector<2x128xf32>
    %cst_154 = arith.constant 5.000000e-01 : f32
    %298 = vector.broadcast %cst_154 : f32 to vector<2x128xf32>
    %299 = arith.mulf %298, %297 : vector<2x128xf32>
    %cst_155 = arith.constant 5.000000e-01 : f32
    %300 = vector.broadcast %cst_155 : f32 to vector<2x128xf32>
    %301 = arith.addf %299, %300 : vector<2x128xf32>
    %302 = arith.mulf %291, %269 : vector<2x128xf32>
    %303 = arith.mulf %283, %293 : vector<2x128xf32>
    %304 = arith.addf %302, %303 : vector<2x128xf32>
    %305 = math.tanh %304 : vector<2x128xf32>
    %306 = arith.mulf %301, %305 : vector<2x128xf32>
    %c0_156 = arith.constant 0 : index
    %c0_157 = arith.constant 0 : index
    %307 = vector.load %arg5[%c0_156, %c0_157] : memref<2x128xf32, #tpu.memory_space<vmem>>, vector<2x128xf32>
    tpu.vector_store %arg5[%c0_156, %c0_157], %304 {strides = array<i32>} : memref<2x128xf32, #tpu.memory_space<vmem>>, vector<2x128xf32>,
    %c0_158 = arith.constant 0 : index
    %c0_159 = arith.constant 0 : index
    %308 = vector.load %arg4[%c0_158, %c0_159] : memref<2x128xf32, #tpu.memory_space<vmem>>, vector<2x128xf32>
    tpu.vector_store %arg4[%c0_158, %c0_159], %306 {strides = array<i32>} : memref<2x128xf32, #tpu.memory_space<vmem>>, vector<2x128xf32>,
    %309 = arith.index_cast %267 : i32 to index
    %c0_160 = arith.constant 0 : index
    %310 = vector.load %arg3[%309, %c0_160] : memref<16x128xf32, #tpu.memory_space<vmem>>, vector<2x128xf32>
    tpu.vector_store %arg3[%309, %c0_160], %306 {strides = array<i32>} : memref<16x128xf32, #tpu.memory_space<vmem>>, vector<2x128xf32>,
    %c7_i32 = arith.constant 7 : i32
    %c2_i32_161 = arith.constant 2 : i32
    %311 = arith.muli %c7_i32, %c2_i32_161 : i32
    %c0_162 = arith.constant 0 : index
    %c0_163 = arith.constant 0 : index
    %312 = vector.load %arg4[%c0_162, %c0_163] : memref<2x128xf32, #tpu.memory_space<vmem>>, vector<2x128xf32>
    %c0_164 = arith.constant 0 : index
    %c0_165 = arith.constant 0 : index
    %313 = vector.load %arg5[%c0_164, %c0_165] : memref<2x128xf32, #tpu.memory_space<vmem>>, vector<2x128xf32>
    %314 = arith.index_cast %311 : i32 to index
    %c0_166 = arith.constant 0 : index
    %315 = vector.load %arg1[%314, %c0_166] : memref<16x512xf32, #tpu.memory_space<vmem>>, vector<2x512xf32>
    %316 = arith.truncf %312 : vector<2x128xf32> to vector<2x128xbf16>
    %c0_167 = arith.constant 0 : index
    %c0_168 = arith.constant 0 : index
    %317 = vector.load %arg2[%c0_167, %c0_168] : memref<128x512xbf16, #tpu.memory_space<vmem>>, vector<128x512xbf16>
    %cst_169 = arith.constant dense<0.000000e+00> : vector<2x512xf32>
    %318 = tpu.matmul %316, %317, %cst_169 {dimension_numbers = #tpu.dot_dimension_numbers<[1], [0], [0], [1], [0, 0, 1, 1], [], []>} : vector<2x128xbf16>, vector<128x512xbf16>, vector<2x512xf32> -> vector<2x512xf32>
    %319 = arith.addf %315, %318 : vector<2x512xf32>
    %320 = vector.extract_strided_slice %319 {offsets = [0, 0], sizes = [2, 128], strides = [1, 1]} : vector<2x512xf32> to vector<2x128xf32>
    %cst_170 = arith.constant 5.000000e-01 : f32
    %321 = vector.broadcast %cst_170 : f32 to vector<2x128xf32>
    %322 = arith.mulf %321, %320 : vector<2x128xf32>
    %323 = math.tanh %322 : vector<2x128xf32>
    %cst_171 = arith.constant 5.000000e-01 : f32
    %324 = vector.broadcast %cst_171 : f32 to vector<2x128xf32>
    %325 = arith.mulf %324, %323 : vector<2x128xf32>
    %cst_172 = arith.constant 5.000000e-01 : f32
    %326 = vector.broadcast %cst_172 : f32 to vector<2x128xf32>
    %327 = arith.addf %325, %326 : vector<2x128xf32>
    %328 = vector.extract_strided_slice %319 {offsets = [0, 128], sizes = [2, 128], strides = [1, 1]} : vector<2x512xf32> to vector<2x128xf32>
    %cst_173 = arith.constant 5.000000e-01 : f32
    %329 = vector.broadcast %cst_173 : f32 to vector<2x128xf32>
    %330 = arith.mulf %329, %328 : vector<2x128xf32>
    %331 = math.tanh %330 : vector<2x128xf32>
    %cst_174 = arith.constant 5.000000e-01 : f32
    %332 = vector.broadcast %cst_174 : f32 to vector<2x128xf32>
    %333 = arith.mulf %332, %331 : vector<2x128xf32>
    %cst_175 = arith.constant 5.000000e-01 : f32
    %334 = vector.broadcast %cst_175 : f32 to vector<2x128xf32>
    %335 = arith.addf %333, %334 : vector<2x128xf32>
    %336 = vector.extract_strided_slice %319 {offsets = [0, 256], sizes = [2, 128], strides = [1, 1]} : vector<2x512xf32> to vector<2x128xf32>
    %337 = math.tanh %336 : vector<2x128xf32>
    %338 = vector.extract_strided_slice %319 {offsets = [0, 384], sizes = [2, 128], strides = [1, 1]} : vector<2x512xf32> to vector<2x128xf32>
    %cst_176 = arith.constant 5.000000e-01 : f32
    %339 = vector.broadcast %cst_176 : f32 to vector<2x128xf32>
    %340 = arith.mulf %339, %338 : vector<2x128xf32>
    %341 = math.tanh %340 : vector<2x128xf32>
    %cst_177 = arith.constant 5.000000e-01 : f32
    %342 = vector.broadcast %cst_177 : f32 to vector<2x128xf32>
    %343 = arith.mulf %342, %341 : vector<2x128xf32>
    %cst_178 = arith.constant 5.000000e-01 : f32
    %344 = vector.broadcast %cst_178 : f32 to vector<2x128xf32>
    %345 = arith.addf %343, %344 : vector<2x128xf32>
    %346 = arith.mulf %335, %313 : vector<2x128xf32>
    %347 = arith.mulf %327, %337 : vector<2x128xf32>
    %348 = arith.addf %346, %347 : vector<2x128xf32>
    %349 = math.tanh %348 : vector<2x128xf32>
    %350 = arith.mulf %345, %349 : vector<2x128xf32>
    %c0_179 = arith.constant 0 : index
    %c0_180 = arith.constant 0 : index
    %351 = vector.load %arg5[%c0_179, %c0_180] : memref<2x128xf32, #tpu.memory_space<vmem>>, vector<2x128xf32>
    tpu.vector_store %arg5[%c0_179, %c0_180], %348 {strides = array<i32>} : memref<2x128xf32, #tpu.memory_space<vmem>>, vector<2x128xf32>,
    %c0_181 = arith.constant 0 : index
    %c0_182 = arith.constant 0 : index
    %352 = vector.load %arg4[%c0_181, %c0_182] : memref<2x128xf32, #tpu.memory_space<vmem>>, vector<2x128xf32>
    tpu.vector_store %arg4[%c0_181, %c0_182], %350 {strides = array<i32>} : memref<2x128xf32, #tpu.memory_space<vmem>>, vector<2x128xf32>,
    %353 = arith.index_cast %311 : i32 to index
    %c0_183 = arith.constant 0 : index
    %354 = vector.load %arg3[%353, %c0_183] : memref<16x128xf32, #tpu.memory_space<vmem>>, vector<2x128xf32>
    tpu.vector_store %arg3[%353, %c0_183], %350 {strides = array<i32>} : memref<16x128xf32, #tpu.memory_space<vmem>>, vector<2x128xf32>,
    %c8_i32 = arith.constant 8 : i32
    return
  }
  func.func @transform_0(%arg0: i32) -> (i32, i32) {
    %c0_i32 = arith.constant 0 : i32
    %c0_i32_0 = arith.constant 0 : i32
    return %arg0, %c0_i32 : i32, i32
  }
  func.func @transform_1(%arg0: i32) -> (i32, i32) {
    %c0_i32 = arith.constant 0 : i32
    %c0_i32_0 = arith.constant 0 : i32
    %c0_i32_1 = arith.constant 0 : i32
    return %c0_i32, %c0_i32_0 : i32, i32
  }
  func.func @transform_2(%arg0: i32) -> (i32, i32) {
    %c0_i32 = arith.constant 0 : i32
    %c0_i32_0 = arith.constant 0 : i32
    return %arg0, %c0_i32 : i32, i32
  }
}

</mosaic_0001>

<llo_original>
// kernel: tpu_custom_call.1
$region0: #{tpu_custom_call.1}
  #allocation0 [shape = 'u32[]', space=smem, size = 0x4, offset = 0x4, fixed_abs, tag = 'smem constant byte address 0x4 - core index']
  #allocation1 [shape = 'u32[144,128]{1,0:T(1,128)}', space=vmem, size = 0x12000, scoped, tag = 'internal scratch']
  #allocation2 [shape = 'f32[2,128]{1,0:T(2,128)}', space=vmem, size = 0x400, scoped, tag = 'scratch operand']
  #allocation3 [shape = 'f32[2,128]{1,0:T(2,128)}', space=vmem, size = 0x400, scoped, tag = 'scratch operand']
  %s0 = inlined_call_operand.hbm [shape: f32[16,512], index: 0, kind: input, shape index: {}]
  %s1 = inlined_call_operand.hbm [shape: bf16[128,512], index: 1, kind: input, shape index: {}]
  %s2 = inlined_call_operand.hbm [shape: f32[16,128], index: 2, kind: output, shape index: {}]
  %s3 = sld [smem:[#allocation0]]
  $region30: #{tpu_custom_call.1} parent=0
    _
  %s5 = ssub.s32 1, %s3
  %s6 = scalar_select 0, %s5, %s3
  $region1: #{tpu_custom_call.1} parent=0
    #allocation4 [shape = 'u8[32768]{0}', space=vmem, size = 0x8000, scoped, tag = 'input window, operand 0, single buffered']
    #allocation5 [shape = 's32[1]{0}', space=sflag, size = 0x4, scoped, tag = 'scoped memory for tpu_custom_call.1']
    #allocation6 [shape = 's32[1]{0}', space=sflag, size = 0x4, scoped, tag = 'scoped memory for tpu_custom_call.1']
    #allocation7 [shape = 'u8[131072]{0}', space=vmem, size = 0x20000, scoped, tag = 'input window, operand 1, single buffered']
    #allocation8 [shape = 's32[1]{0}', space=sflag, size = 0x4, scoped, tag = 'scoped memory for tpu_custom_call.1']
    #allocation9 [shape = 'u8[8192]{0}', space=vmem, size = 0x2000, scoped, tag = 'output window, operand 0, single buffered']
    %7 = vsyncpa [#allocation5], 0
    %8 = vsyncpa [#allocation8], 0
    %9 = vsyncpa [#allocation6], 0
    // Predicated region
    $region2: #{tpu_custom_call.1} parent=1 // pred_check
      _
    $region3: #{tpu_custom_call.1} parent=1 // pred_check_branch
      %11 = sbr.rel (0) target = $region5
    $region4: #{tpu_custom_call.1} parent=1 // pred_region
      %s13 = ssub.s32 1024, 1024
      %14 = vsyncadd [#allocation5], %s13
      %s15 = sshll.u32 [#allocation4], 4
      %s16 = int_to_ptr.vmem [resolvable:$true] %s15
      %21 = dma.hbm_to_vmem [thread:$0]  %s0, 1024, %s16, [#allocation5], 512, 512, 32
    $region5: #{tpu_custom_call.1} parent=1 // pred_fallthru
      _
    // Predicated region
    $region6: #{tpu_custom_call.1} parent=1 // pred_check
      _
    $region7: #{tpu_custom_call.1} parent=1 // pred_check_branch
      %23 = sbr.rel (0) target = $region9
    $region8: #{tpu_custom_call.1} parent=1 // pred_region
      %s25 = ssub.s32 4096, 4096
      %26 = vsyncadd [#allocation8], %s25
      %s27 = sshll.u32 [#allocation7], 4
      %s28 = int_to_ptr.vmem [resolvable:$true] %s27
      %33 = dma.hbm_to_vmem [thread:$0]  %s1, 4096, %s28, [#allocation8], 256, 256, 16
    $region9: #{tpu_custom_call.1} parent=1 // pred_fallthru
      _
    // Predicated region
    $region10: #{tpu_custom_call.1} parent=1 // pred_check
      _
    $region11: #{tpu_custom_call.1} parent=1 // pred_check_branch
      %35 = sbr.rel (0) target = $region13
    $region12: #{tpu_custom_call.1} parent=1 // pred_region
      %36 = dma.done [#allocation5], 1024
    $region13: #{tpu_custom_call.1} parent=1 // pred_fallthru
      _
    // Predicated region
    $region14: #{tpu_custom_call.1} parent=1 // pred_check
      _
    $region15: #{tpu_custom_call.1} parent=1 // pred_check_branch
      %38 = sbr.rel (0) target = $region17
    $region16: #{tpu_custom_call.1} parent=1 // pred_region
      %39 = dma.done [#allocation8], 4096
    $region17: #{tpu_custom_call.1} parent=1 // pred_fallthru
      _
    %p41 = scmp.eq.s32.totalorder 0, 0
    // Predicated region
    $region18: #{tpu_custom_call.1} parent=1 // pred_check
      %p42 = pneg %p41
    $region19: #{tpu_custom_call.1} parent=1 // pred_check_branch
      %44 = sbr.rel (%p42) target = $region21
    $region20: #{tpu_custom_call.1} parent=1 // pred_region
      %45 = vst [vmem:[#allocation2] sm:$0x3] 0.0
      %46 = vst [vmem:[#allocation3] sm:$0x3] 0.0
    $region21: #{tpu_custom_call.1} parent=1 // pred_fallthru
      _
    %v47 = vld [vmem:[#allocation2] sm:$0x3]
    %v48 = vld [vmem:[#allocation3] sm:$0x3]
    %v49 = vld [vmem:[#allocation4] sm:$0x3]
    %v50 = vld [vmem:[#allocation4 + $0x8] sm:$0x3]
    %v51 = vld [vmem:[#allocation4 + $0x10] sm:$0x3]
    %v52 = vld [vmem:[#allocation4 + $0x18] sm:$0x3]
    %v53 = vpack.c.bf16 %v47, %v47
    %v54 = vld [vmem:[#allocation7] sm:$0xff]
    %v55 = vld [vmem:[#allocation7 + $0x8] sm:$0xff]
    %v56 = vld [vmem:[#allocation7 + $0x10] sm:$0xff]
    %v57 = vld [vmem:[#allocation7 + $0x18] sm:$0xff]
    %v58 = vld [vmem:[#allocation7 + $0x20] sm:$0xff]
    %v59 = vld [vmem:[#allocation7 + $0x28] sm:$0xff]
    %v60 = vld [vmem:[#allocation7 + $0x30] sm:$0xff]
    %v61 = vld [vmem:[#allocation7 + $0x38] sm:$0xff]
    %v62 = vld [vmem:[#allocation7 + $0x40] sm:$0xff]
    %v63 = vld [vmem:[#allocation7 + $0x48] sm:$0xff]
    %v64 = vld [vmem:[#allocation7 + $0x50] sm:$0xff]
    %v65 = vld [vmem:[#allocation7 + $0x58] sm:$0xff]
    %v66 = vld [vmem:[#allocation7 + $0x60] sm:$0xff]
    %v67 = vld [vmem:[#allocation7 + $0x68] sm:$0xff]
    %v68 = vld [vmem:[#allocation7 + $0x70] sm:$0xff]
    %v69 = vld [vmem:[#allocation7 + $0x78] sm:$0xff]
    %v70 = vld [vmem:[#allocation7 + $0x80] sm:$0xff]
    %v71 = vld [vmem:[#allocation7 + $0x88] sm:$0xff]
    %v72 = vld [vmem:[#allocation7 + $0x90] sm:$0xff]
    %v73 = vld [vmem:[#allocation7 + $0x98] sm:$0xff]
    %v74 = vld [vmem:[#allocation7 + $0xa0] sm:$0xff]
    %v75 = vld [vmem:[#allocation7 + $0xa8] sm:$0xff]
    %v76 = vld [vmem:[#allocation7 + $0xb0] sm:$0xff]
    %v77 = vld [vmem:[#allocation7 + $0xb8] sm:$0xff]
    %v78 = vld [vmem:[#allocation7 + $0xc0] sm:$0xff]
    %v79 = vld [vmem:[#allocation7 + $0xc8] sm:$0xff]
    %v80 = vld [vmem:[#allocation7 + $0xd0] sm:$0xff]
    %v81 = vld [vmem:[#allocation7 + $0xd8] sm:$0xff]
    %v82 = vld [vmem:[#allocation7 + $0xe0] sm:$0xff]
    %v83 = vld [vmem:[#allocation7 + $0xe8] sm:$0xff]
    %v84 = vld [vmem:[#allocation7 + $0xf0] sm:$0xff]
    %v85 = vld [vmem:[#allocation7 + $0xf8] sm:$0xff]
    %v118 = vunpack.c.l.b16 %v54
    %v119 = vunpack.c.h.b16 %v54
    %v120 = vunpack.c.l.b16 %v55
    %v121 = vunpack.c.h.b16 %v55
    %v122 = vunpack.c.l.b16 %v56
    %v123 = vunpack.c.h.b16 %v56
    %v124 = vunpack.c.l.b16 %v57
    %v125 = vunpack.c.h.b16 %v57
    %v126 = vunpack.c.l.b16 %v58
    %v127 = vunpack.c.h.b16 %v58
    %v128 = vunpack.c.l.b16 %v59
    %v129 = vunpack.c.h.b16 %v59
    %v130 = vunpack.c.l.b16 %v60
    %v131 = vunpack.c.h.b16 %v60
    %v132 = vunpack.c.l.b16 %v61
    %v133 = vunpack.c.h.b16 %v61
    %v134 = vunpack.c.l.b16 %v62
    %v135 = vunpack.c.h.b16 %v62
    %v136 = vunpack.c.l.b16 %v63
    %v137 = vunpack.c.h.b16 %v63
    %v138 = vunpack.c.l.b16 %v64
    %v139 = vunpack.c.h.b16 %v64
    %v140 = vunpack.c.l.b16 %v65
    %v141 = vunpack.c.h.b16 %v65
    %v142 = vunpack.c.l.b16 %v66
    %v143 = vunpack.c.h.b16 %v66
    %v144 = vunpack.c.l.b16 %v67
    %v145 = vunpack.c.h.b16 %v67
    %v146 = vunpack.c.l.b16 %v68
    %v147 = vunpack.c.h.b16 %v68
    %v148 = vunpack.c.l.b16 %v69
    %v149 = vunpack.c.h.b16 %v69
    %v150 = vunpack.c.l.b16 %v70
    %v151 = vunpack.c.h.b16 %v70
    %v152 = vunpack.c.l.b16 %v71
    %v153 = vunpack.c.h.b16 %v71
    %v154 = vunpack.c.l.b16 %v72
    %v155 = vunpack.c.h.b16 %v72
    %v156 = vunpack.c.l.b16 %v73
    %v157 = vunpack.c.h.b16 %v73
    %v158 = vunpack.c.l.b16 %v74
    %v159 = vunpack.c.h.b16 %v74
    %v160 = vunpack.c.l.b16 %v75
    %v161 = vunpack.c.h.b16 %v75
    %v162 = vunpack.c.l.b16 %v76
    %v163 = vunpack.c.h.b16 %v76
    %v164 = vunpack.c.l.b16 %v77
    %v165 = vunpack.c.h.b16 %v77
    %v166 = vunpack.c.l.b16 %v78
    %v167 = vunpack.c.h.b16 %v78
    %v168 = vunpack.c.l.b16 %v79
    %v169 = vunpack.c.h.b16 %v79
    %v170 = vunpack.c.l.b16 %v80
    %v171 = vunpack.c.h.b16 %v80
    %v172 = vunpack.c.l.b16 %v81
    %v173 = vunpack.c.h.b16 %v81
    %v174 = vunpack.c.l.b16 %v82
    %v175 = vunpack.c.h.b16 %v82
    %v176 = vunpack.c.l.b16 %v83
    %v177 = vunpack.c.h.b16 %v83
    %v178 = vunpack.c.l.b16 %v84
    %v179 = vunpack.c.h.b16 %v84
    %v180 = vunpack.c.l.b16 %v85
    %v181 = vunpack.c.h.b16 %v85
    %v182 = vpack.c.b16 %v122, %v118
    %v183 = vpack.c.b16 %v123, %v119
    %v184 = vpack.c.b16 %v124, %v120
    %v185 = vpack.c.b16 %v125, %v121
    %v186 = vpack.c.b16 %v130, %v126
    %v187 = vpack.c.b16 %v131, %v127
    %v188 = vpack.c.b16 %v132, %v128
    %v189 = vpack.c.b16 %v133, %v129
    %v190 = vpack.c.b16 %v138, %v134
    %v191 = vpack.c.b16 %v139, %v135
    %v192 = vpack.c.b16 %v140, %v136
    %v193 = vpack.c.b16 %v141, %v137
    %v194 = vpack.c.b16 %v146, %v142
    %v195 = vpack.c.b16 %v147, %v143
    %v196 = vpack.c.b16 %v148, %v144
    %v197 = vpack.c.b16 %v149, %v145
    %v198 = vpack.c.b16 %v154, %v150
    %v199 = vpack.c.b16 %v155, %v151
    %v200 = vpack.c.b16 %v156, %v152
    %v201 = vpack.c.b16 %v157, %v153
    %v202 = vpack.c.b16 %v162, %v158
    %v203 = vpack.c.b16 %v163, %v159
    %v204 = vpack.c.b16 %v164, %v160
    %v205 = vpack.c.b16 %v165, %v161
    %v206 = vpack.c.b16 %v170, %v166
    %v207 = vpack.c.b16 %v171, %v167
    %v208 = vpack.c.b16 %v172, %v168
    %v209 = vpack.c.b16 %v173, %v169
    %v210 = vpack.c.b16 %v178, %v174
    %v211 = vpack.c.b16 %v179, %v175
    %v212 = vpack.c.b16 %v180, %v176
    %v213 = vpack.c.b16 %v181, %v177
    %246 = vmatprep.subr.bf16.mxu0 %v183
    %247 = vmatpush1.bf16.msra.mxu0 %v182
    %248 = vmatprep.subr.bf16.mxu0 %v187
    %249 = vmatpush1.bf16.msra.mxu0 %v186
    %250 = vmatprep.subr.bf16.mxu0 %v191
    %251 = vmatpush1.bf16.msra.mxu0 %v190
    %252 = vmatprep.subr.bf16.mxu0 %v195
    %253 = vmatpush1.bf16.msra.mxu0 %v194
    %254 = vmatprep.subr.bf16.mxu0 %v199
    %255 = vmatpush1.bf16.msra.mxu0 %v198
    %256 = vmatprep.subr.bf16.mxu0 %v203
    %257 = vmatpush1.bf16.msra.mxu0 %v202
    %258 = vmatprep.subr.bf16.mxu0 %v207
    %259 = vmatpush1.bf16.msra.mxu0 %v206
    %260 = vmatprep.subr.bf16.mxu0 %v211
    %261 = vmatpush1.bf16.msra.mxu0 %v210
    %262 = vmatprep.subr.bf16.mxu0 0
    %263 = vmatpush1.bf16.msra.mxu0 0
    %264 = vmatprep.subr.bf16.mxu0 0
    %265 = vmatpush1.bf16.msra.mxu0 0
    %266 = vmatprep.subr.bf16.mxu0 0
    %267 = vmatpush1.bf16.msra.mxu0 0
    %268 = vmatprep.subr.bf16.mxu0 0
    %269 = vmatpush1.bf16.msra.mxu0 0
    %270 = vmatprep.subr.bf16.mxu0 0
    %271 = vmatpush1.bf16.msra.mxu0 0
    %272 = vmatprep.subr.bf16.mxu0 0
    %273 = vmatpush1.bf16.msra.mxu0 0
    %274 = vmatprep.subr.bf16.mxu0 0
    %275 = vmatpush1.bf16.msra.mxu0 0
    %276 = vmatprep.subr.bf16.mxu0 0
    %277 = vmatpush1.bf16.msra.mxu0 0
    %278 = vmatprep.mubr.bf16.mxu0 0
    %279 = vmatmul.mubr.bf16.gmra.mrb[0].mxu0 %v53
    %v280 = vpop.f32.mrb[0].mxu0
    %v281 = vadd.f32 0.0, %v280
    %v282 = vpop.f32.mrb[0].mxu0
    %v283 = vadd.f32 0.0, %v282
    %v284 = vpop.f32.mrb[0].mxu0
    %v285 = vpop.f32.mrb[0].mxu0
    %286 = vdwg.mxu0
    %287 = vmatprep.subr.bf16.mxu0 %v185
    %288 = vmatpush1.bf16.msra.mxu0 %v184
    %289 = vmatprep.subr.bf16.mxu0 %v189
    %290 = vmatpush1.bf16.msra.mxu0 %v188
    %291 = vmatprep.subr.bf16.mxu0 %v193
    %292 = vmatpush1.bf16.msra.mxu0 %v192
    %293 = vmatprep.subr.bf16.mxu0 %v197
    %294 = vmatpush1.bf16.msra.mxu0 %v196
    %295 = vmatprep.subr.bf16.mxu0 %v201
    %296 = vmatpush1.bf16.msra.mxu0 %v200
    %297 = vmatprep.subr.bf16.mxu0 %v205
    %298 = vmatpush1.bf16.msra.mxu0 %v204
    %299 = vmatprep.subr.bf16.mxu0 %v209
    %300 = vmatpush1.bf16.msra.mxu0 %v208
    %301 = vmatprep.subr.bf16.mxu0 %v213
    %302 = vmatpush1.bf16.msra.mxu0 %v212
    %303 = vmatprep.subr.bf16.mxu0 0
    %304 = vmatpush1.bf16.msra.mxu0 0
    %305 = vmatprep.subr.bf16.mxu0 0
    %306 = vmatpush1.bf16.msra.mxu0 0
    %307 = vmatprep.subr.bf16.mxu0 0
    %308 = vmatpush1.bf16.msra.mxu0 0
    %309 = vmatprep.subr.bf16.mxu0 0
    %310 = vmatpush1.bf16.msra.mxu0 0
    %311 = vmatprep.subr.bf16.mxu0 0
    %312 = vmatpush1.bf16.msra.mxu0 0
    %313 = vmatprep.subr.bf16.mxu0 0
    %314 = vmatpush1.bf16.msra.mxu0 0
    %315 = vmatprep.subr.bf16.mxu0 0
    %316 = vmatpush1.bf16.msra.mxu0 0
    %317 = vmatprep.subr.bf16.mxu0 0
    %318 = vmatpush1.bf16.msra.mxu0 0
    %319 = vmatprep.mubr.bf16.mxu0 0
    %320 = vmatmul.mubr.bf16.gmra.mrb[0].mxu0 %v53
    %v321 = vpop.f32.mrb[0].mxu0
    %v322 = vadd.f32 0.0, %v321
    %v323 = vpop.f32.mrb[0].mxu0
    %v324 = vadd.f32 0.0, %v323
    %v325 = vpop.f32.mrb[0].mxu0
    %v326 = vpop.f32.mrb[0].mxu0
    %327 = vdwg.mxu0
    %v328 = vadd.f32 %v49, %v281
    %v329 = vadd.f32 %v50, %v283
    %v330 = vadd.f32 %v51, %v322
    %v331 = vadd.f32 %v52, %v324
    %v332 = vmul.f32 %v328, 0.5
    %v333 = vtanh.pop %v332
    %v334 = vmul.f32 %v333, 0.5
    %v335 = vadd.f32 %v334, 0.5
    %v336 = vmul.f32 %v329, 0.5
    %v337 = vtanh.pop %v336
    %v338 = vmul.f32 %v337, 0.5
    %v339 = vadd.f32 %v338, 0.5
    %v340 = vtanh.pop %v330
    %v341 = vmul.f32 %v331, 0.5
    %v342 = vtanh.pop %v341
    %v343 = vmul.f32 %v342, 0.5
    %v344 = vadd.f32 %v343, 0.5
    %v345 = vmul.f32 %v339, %v48
    %v346 = vmul.f32 %v335, %v340
    %v347 = vadd.f32 %v345, %v346
    %v348 = vtanh.pop %v347
    %v349 = vmul.f32 %v344, %v348
    %350 = vst [vmem:[#allocation3] sm:$0x3] %v347
    %351 = vst [vmem:[#allocation2] sm:$0x3] %v349
    %352 = vst [vmem:[#allocation9] sm:$0x3] %v349
    %v353 = vld [vmem:[#allocation2] sm:$0x3]
    %v354 = vld [vmem:[#allocation3] sm:$0x3]
    %v355 = vld [vmem:[#allocation4] sm:$0xc]
    %v356 = vld [vmem:[#allocation4 + $0x8] sm:$0xc]
    %v357 = vld [vmem:[#allocation4 + $0x10] sm:$0xc]
    %v358 = vld [vmem:[#allocation4 + $0x18] sm:$0xc]
    %v359 = vpack.c.bf16 %v353, %v353
    %v360 = vld [vmem:[#allocation7] sm:$0xff]
    %v361 = vld [vmem:[#allocation7 + $0x8] sm:$0xff]
    %v362 = vld [vmem:[#allocation7 + $0x10] sm:$0xff]
    %v363 = vld [vmem:[#allocation7 + $0x18] sm:$0xff]
    %v364 = vld [vmem:[#allocation7 + $0x20] sm:$0xff]
    %v365 = vld [vmem:[#allocation7 + $0x28] sm:$0xff]
    %v366 = vld [vmem:[#allocation7 + $0x30] sm:$0xff]
    %v367 = vld [vmem:[#allocation7 + $0x38] sm:$0xff]
    %v368 = vld [vmem:[#allocation7 + $0x40] sm:$0xff]
    %v369 = vld [vmem:[#allocation7 + $0x48] sm:$0xff]
    %v370 = vld [vmem:[#allocation7 + $0x50] sm:$0xff]
    %v371 = vld [vmem:[#allocation7 + $0x58] sm:$0xff]
    %v372 = vld [vmem:[#allocation7 + $0x60] sm:$0xff]
    %v373 = vld [vmem:[#allocation7 + $0x68] sm:$0xff]
    %v374 = vld [vmem:[#allocation7 + $0x70] sm:$0xff]
    %v375 = vld [vmem:[#allocation7 + $0x78] sm:$0xff]
    %v376 = vld [vmem:[#allocation7 + $0x80] sm:$0xff]
    %v377 = vld [vmem:[#allocation7 + $0x88] sm:$0xff]
    %v378 = vld [vmem:[#allocation7 + $0x90] sm:$0xff]
    %v379 = vld [vmem:[#allocation7 + $0x98] sm:$0xff]
    %v380 = vld [vmem:[#allocation7 + $0xa0] sm:$0xff]
    %v381 = vld [vmem:[#allocation7 + $0xa8] sm:$0xff]
    %v382 = vld [vmem:[#allocation7 + $0xb0] sm:$0xff]
    %v383 = vld [vmem:[#allocation7 + $0xb8] sm:$0xff]
    %v384 = vld [vmem:[#allocation7 + $0xc0] sm:$0xff]
    %v385 = vld [vmem:[#allocation7 + $0xc8] sm:$0xff]
    %v386 = vld [vmem:[#allocation7 + $0xd0] sm:$0xff]
    %v387 = vld [vmem:[#allocation7 + $0xd8] sm:$0xff]
    %v388 = vld [vmem:[#allocation7 + $0xe0] sm:$0xff]
    %v389 = vld [vmem:[#allocation7 + $0xe8] sm:$0xff]
    %v390 = vld [vmem:[#allocation7 + $0xf0] sm:$0xff]
    %v391 = vld [vmem:[#allocation7 + $0xf8] sm:$0xff]
    %v424 = vunpack.c.l.b16 %v360
    %v425 = vunpack.c.h.b16 %v360
    %v426 = vunpack.c.l.b16 %v361
    %v427 = vunpack.c.h.b16 %v361
    %v428 = vunpack.c.l.b16 %v362
    %v429 = vunpack.c.h.b16 %v362
    %v430 = vunpack.c.l.b16 %v363
    %v431 = vunpack.c.h.b16 %v363
    %v432 = vunpack.c.l.b16 %v364
    %v433 = vunpack.c.h.b16 %v364
    %v434 = vunpack.c.l.b16 %v365
    %v435 = vunpack.c.h.b16 %v365
    %v436 = vunpack.c.l.b16 %v366
    %v437 = vunpack.c.h.b16 %v366
    %v438 = vunpack.c.l.b16 %v367
    %v439 = vunpack.c.h.b16 %v367
    %v440 = vunpack.c.l.b16 %v368
    %v441 = vunpack.c.h.b16 %v368
    %v442 = vunpack.c.l.b16 %v369
    %v443 = vunpack.c.h.b16 %v369
    %v444 = vunpack.c.l.b16 %v370
    %v445 = vunpack.c.h.b16 %v370
    %v446 = vunpack.c.l.b16 %v371
    %v447 = vunpack.c.h.b16 %v371
    %v448 = vunpack.c.l.b16 %v372
    %v449 = vunpack.c.h.b16 %v372
    %v450 = vunpack.c.l.b16 %v373
    %v451 = vunpack.c.h.b16 %v373
    %v452 = vunpack.c.l.b16 %v374
    %v453 = vunpack.c.h.b16 %v374
    %v454 = vunpack.c.l.b16 %v375
    %v455 = vunpack.c.h.b16 %v375
    %v456 = vunpack.c.l.b16 %v376
    %v457 = vunpack.c.h.b16 %v376
    %v458 = vunpack.c.l.b16 %v377
    %v459 = vunpack.c.h.b16 %v377
    %v460 = vunpack.c.l.b16 %v378
    %v461 = vunpack.c.h.b16 %v378
    %v462 = vunpack.c.l.b16 %v379
    %v463 = vunpack.c.h.b16 %v379
    %v464 = vunpack.c.l.b16 %v380
    %v465 = vunpack.c.h.b16 %v380
    %v466 = vunpack.c.l.b16 %v381
    %v467 = vunpack.c.h.b16 %v381
    %v468 = vunpack.c.l.b16 %v382
    %v469 = vunpack.c.h.b16 %v382
    %v470 = vunpack.c.l.b16 %v383
    %v471 = vunpack.c.h.b16 %v383
    %v472 = vunpack.c.l.b16 %v384
    %v473 = vunpack.c.h.b16 %v384
    %v474 = vunpack.c.l.b16 %v385
    %v475 = vunpack.c.h.b16 %v385
    %v476 = vunpack.c.l.b16 %v386
    %v477 = vunpack.c.h.b16 %v386
    %v478 = vunpack.c.l.b16 %v387
    %v479 = vunpack.c.h.b16 %v387
    %v480 = vunpack.c.l.b16 %v388
    %v481 = vunpack.c.h.b16 %v388
    %v482 = vunpack.c.l.b16 %v389
    %v483 = vunpack.c.h.b16 %v389
    %v484 = vunpack.c.l.b16 %v390
    %v485 = vunpack.c.h.b16 %v390
    %v486 = vunpack.c.l.b16 %v391
    %v487 = vunpack.c.h.b16 %v391
    %v488 = vpack.c.b16 %v428, %v424
    %v489 = vpack.c.b16 %v429, %v425
    %v490 = vpack.c.b16 %v430, %v426
    %v491 = vpack.c.b16 %v431, %v427
    %v492 = vpack.c.b16 %v436, %v432
    %v493 = vpack.c.b16 %v437, %v433
    %v494 = vpack.c.b16 %v438, %v434
    %v495 = vpack.c.b16 %v439, %v435
    %v496 = vpack.c.b16 %v444, %v440
    %v497 = vpack.c.b16 %v445, %v441
    %v498 = vpack.c.b16 %v446, %v442
    %v499 = vpack.c.b16 %v447, %v443
    %v500 = vpack.c.b16 %v452, %v448
    %v501 = vpack.c.b16 %v453, %v449
    %v502 = vpack.c.b16 %v454, %v450
    %v503 = vpack.c.b16 %v455, %v451
    %v504 = vpack.c.b16 %v460, %v456
    %v505 = vpack.c.b16 %v461, %v457
    %v506 = vpack.c.b16 %v462, %v458
    %v507 = vpack.c.b16 %v463, %v459
    %v508 = vpack.c.b16 %v468, %v464
    %v509 = vpack.c.b16 %v469, %v465
    %v510 = vpack.c.b16 %v470, %v466
    %v511 = vpack.c.b16 %v471, %v467
    %v512 = vpack.c.b16 %v476, %v472
    %v513 = vpack.c.b16 %v477, %v473
    %v514 = vpack.c.b16 %v478, %v474
    %v515 = vpack.c.b16 %v479, %v475
    %v516 = vpack.c.b16 %v484, %v480
    %v517 = vpack.c.b16 %v485, %v481
    %v518 = vpack.c.b16 %v486, %v482
    %v519 = vpack.c.b16 %v487, %v483
    %552 = vmatprep.subr.bf16.mxu0 %v489
    %553 = vmatpush1.bf16.msra.mxu0 %v488
    %554 = vmatprep.subr.bf16.mxu0 %v493
    %555 = vmatpush1.bf16.msra.mxu0 %v492
    %556 = vmatprep.subr.bf16.mxu0 %v497
    %557 = vmatpush1.bf16.msra.mxu0 %v496
    %558 = vmatprep.subr.bf16.mxu0 %v501
    %559 = vmatpush1.bf16.msra.mxu0 %v500
    %560 = vmatprep.subr.bf16.mxu0 %v505
    %561 = vmatpush1.bf16.msra.mxu0 %v504
    %562 = vmatprep.subr.bf16.mxu0 %v509
    %563 = vmatpush1.bf16.msra.mxu0 %v508
    %564 = vmatprep.subr.bf16.mxu0 %v513
    %565 = vmatpush1.bf16.msra.mxu0 %v512
    %566 = vmatprep.subr.bf16.mxu0 %v517
    %567 = vmatpush1.bf16.msra.mxu0 %v516
    %568 = vmatprep.subr.bf16.mxu0 0
    %569 = vmatpush1.bf16.msra.mxu0 0
    %570 = vmatprep.subr.bf16.mxu0 0
    %571 = vmatpush1.bf16.msra.mxu0 0
    %572 = vmatprep.subr.bf16.mxu0 0
    %573 = vmatpush1.bf16.msra.mxu0 0
    %574 = vmatprep.subr.bf16.mxu0 0
    %575 = vmatpush1.bf16.msra.mxu0 0
    %576 = vmatprep.subr.bf16.mxu0 0
    %577 = vmatpush1.bf16.msra.mxu0 0
    %578 = vmatprep.subr.bf16.mxu0 0
    %579 = vmatpush1.bf16.msra.mxu0 0
    %580 = vmatprep.subr.bf16.mxu0 0
    %581 = vmatpush1.bf16.msra.mxu0 0
    %582 = vmatprep.subr.bf16.mxu0 0
    %583 = vmatpush1.bf16.msra.mxu0 0
    %584 = vmatprep.mubr.bf16.mxu0 0
    %585 = vmatmul.mubr.bf16.gmra.mrb[0].mxu0 %v359
    %v586 = vpop.f32.mrb[0].mxu0
    %v587 = vadd.f32 0.0, %v586
    %v588 = vpop.f32.mrb[0].mxu0
    %v589 = vadd.f32 0.0, %v588
    %v590 = vpop.f32.mrb[0].mxu0
    %v591 = vpop.f32.mrb[0].mxu0
    %592 = vdwg.mxu0
    %593 = vmatprep.subr.bf16.mxu0 %v491
    %594 = vmatpush1.bf16.msra.mxu0 %v490
    %595 = vmatprep.subr.bf16.mxu0 %v495
    %596 = vmatpush1.bf16.msra.mxu0 %v494
    %597 = vmatprep.subr.bf16.mxu0 %v499
    %598 = vmatpush1.bf16.msra.mxu0 %v498
    %599 = vmatprep.subr.bf16.mxu0 %v503
    %600 = vmatpush1.bf16.msra.mxu0 %v502
    %601 = vmatprep.subr.bf16.mxu0 %v507
    %602 = vmatpush1.bf16.msra.mxu0 %v506
    %603 = vmatprep.subr.bf16.mxu0 %v511
    %604 = vmatpush1.bf16.msra.mxu0 %v510
    %605 = vmatprep.subr.bf16.mxu0 %v515
    %606 = vmatpush1.bf16.msra.mxu0 %v514
    %607 = vmatprep.subr.bf16.mxu0 %v519
    %608 = vmatpush1.bf16.msra.mxu0 %v518
    %609 = vmatprep.subr.bf16.mxu0 0
    %610 = vmatpush1.bf16.msra.mxu0 0
    %611 = vmatprep.subr.bf16.mxu0 0
    %612 = vmatpush1.bf16.msra.mxu0 0
    %613 = vmatprep.subr.bf16.mxu0 0
    %614 = vmatpush1.bf16.msra.mxu0 0
    %615 = vmatprep.subr.bf16.mxu0 0
    %616 = vmatpush1.bf16.msra.mxu0 0
    %617 = vmatprep.subr.bf16.mxu0 0
    %618 = vmatpush1.bf16.msra.mxu0 0
    %619 = vmatprep.subr.bf16.mxu0 0
    %620 = vmatpush1.bf16.msra.mxu0 0
    %621 = vmatprep.subr.bf16.mxu0 0
    %622 = vmatpush1.bf16.msra.mxu0 0
    %623 = vmatprep.subr.bf16.mxu0 0
    %624 = vmatpush1.bf16.msra.mxu0 0
    %625 = vmatprep.mubr.bf16.mxu0 0
    %626 = vmatmul.mubr.bf16.gmra.mrb[0].mxu0 %v359
    %v627 = vpop.f32.mrb[0].mxu0
    %v628 = vadd.f32 0.0, %v627
    %v629 = vpop.f32.mrb[0].mxu0
    %v630 = vadd.f32 0.0, %v629
    %v631 = vpop.f32.mrb[0].mxu0
    %v632 = vpop.f32.mrb[0].mxu0
    %633 = vdwg.mxu0
    %v638 = vrot.slane %v587, 6
    %v639 = vrot.slane %v589, 6
    %v640 = vrot.slane %v628, 6
    %v641 = vrot.slane %v630, 6
    %v646 = vadd.f32 %v355, %v638
    %v647 = vadd.f32 %v356, %v639
    %v648 = vadd.f32 %v357, %v640
    %v649 = vadd.f32 %v358, %v641
    %v650 = vmul.f32 %v646, 0.5
    %v651 = vtanh.pop %v650
    %v652 = vmul.f32 %v651, 0.5
    %v653 = vadd.f32 %v652, 0.5
    %v654 = vmul.f32 %v647, 0.5
    %v655 = vtanh.pop %v654
    %v656 = vmul.f32 %v655, 0.5
    %v657 = vadd.f32 %v656, 0.5
    %v658 = vtanh.pop %v648
    %v659 = vmul.f32 %v649, 0.5
    %v660 = vtanh.pop %v659
    %v661 = vmul.f32 %v660, 0.5
    %v662 = vadd.f32 %v661, 0.5
    %v664 = vrot.slane %v354, 6
    %v666 = vmul.f32 %v657, %v664
    %v667 = vmul.f32 %v653, %v658
    %v668 = vadd.f32 %v666, %v667
    %v669 = vtanh.pop %v668
    %v670 = vmul.f32 %v662, %v669
    %671 = vst [vmem:[#allocation3 - $0x2] sm:$0xc] %v668
    %672 = vst [vmem:[#allocation2 - $0x2] sm:$0xc] %v670
    %673 = vst [vmem:[#allocation9] sm:$0xc] %v670
    %v674 = vld [vmem:[#allocation2] sm:$0x3]
    %v675 = vld [vmem:[#allocation3] sm:$0x3]
    %v676 = vld [vmem:[#allocation4] sm:$0x30]
    %v677 = vld [vmem:[#allocation4 + $0x8] sm:$0x30]
    %v678 = vld [vmem:[#allocation4 + $0x10] sm:$0x30]
    %v679 = vld [vmem:[#allocation4 + $0x18] sm:$0x30]
    %v680 = vpack.c.bf16 %v674, %v674
    %v681 = vld [vmem:[#allocation7] sm:$0xff]
    %v682 = vld [vmem:[#allocation7 + $0x8] sm:$0xff]
    %v683 = vld [vmem:[#allocation7 + $0x10] sm:$0xff]
    %v684 = vld [vmem:[#allocation7 + $0x18] sm:$0xff]
    %v685 = vld [vmem:[#allocation7 + $0x20] sm:$0xff]
    %v686 = vld [vmem:[#allocation7 + $0x28] sm:$0xff]
    %v687 = vld [vmem:[#allocation7 + $0x30] sm:$0xff]
    %v688 = vld [vmem:[#allocation7 + $0x38] sm:$0xff]
    %v689 = vld [vmem:[#allocation7 + $0x40] sm:$0xff]
    %v690 = vld [vmem:[#allocation7 + $0x48] sm:$0xff]
    %v691 = vld [vmem:[#allocation7 + $0x50] sm:$0xff]
    %v692 = vld [vmem:[#allocation7 + $0x58] sm:$0xff]
    %v693 = vld [vmem:[#allocation7 + $0x60] sm:$0xff]
    %v694 = vld [vmem:[#allocation7 + $0x68] sm:$0xff]
    %v695 = vld [vmem:[#allocation7 + $0x70] sm:$0xff]
    %v696 = vld [vmem:[#allocation7 + $0x78] sm:$0xff]
    %v697 = vld [vmem:[#allocation7 + $0x80] sm:$0xff]
    %v698 = vld [vmem:[#allocation7 + $0x88] sm:$0xff]
    %v699 = vld [vmem:[#allocation7 + $0x90] sm:$0xff]
    %v700 = vld [vmem:[#allocation7 + $0x98] sm:$0xff]
    %v701 = vld [vmem:[#allocation7 + $0xa0] sm:$0xff]
    %v702 = vld [vmem:[#allocation7 + $0xa8] sm:$0xff]
    %v703 = vld [vmem:[#allocation7 + $0xb0] sm:$0xff]
    %v704 = vld [vmem:[#allocation7 + $0xb8] sm:$0xff]
    %v705 = vld [vmem:[#allocation7 + $0xc0] sm:$0xff]
    %v706 = vld [vmem:[#allocation7 + $0xc8] sm:$0xff]
    %v707 = vld [vmem:[#allocation7 + $0xd0] sm:$0xff]
    %v708 = vld [vmem:[#allocation7 + $0xd8] sm:$0xff]
    %v709 = vld [vmem:[#allocation7 + $0xe0] sm:$0xff]
    %v710 = vld [vmem:[#allocation7 + $0xe8] sm:$0xff]
    %v711 = vld [vmem:[#allocation7 + $0xf0] sm:$0xff]
    %v712 = vld [vmem:[#allocation7 + $0xf8] sm:$0xff]
    %v745 = vunpack.c.l.b16 %v681
    %v746 = vunpack.c.h.b16 %v681
    %v747 = vunpack.c.l.b16 %v682
    %v748 = vunpack.c.h.b16 %v682
    %v749 = vunpack.c.l.b16 %v683
    %v750 = vunpack.c.h.b16 %v683
    %v751 = vunpack.c.l.b16 %v684
    %v752 = vunpack.c.h.b16 %v684
    %v753 = vunpack.c.l.b16 %v685
    %v754 = vunpack.c.h.b16 %v685
    %v755 = vunpack.c.l.b16 %v686
    %v756 = vunpack.c.h.b16 %v686
    %v757 = vunpack.c.l.b16 %v687
    %v758 = vunpack.c.h.b16 %v687
    %v759 = vunpack.c.l.b16 %v688
    %v760 = vunpack.c.h.b16 %v688
    %v761 = vunpack.c.l.b16 %v689
    %v762 = vunpack.c.h.b16 %v689
    %v763 = vunpack.c.l.b16 %v690
    %v764 = vunpack.c.h.b16 %v690
    %v765 = vunpack.c.l.b16 %v691
    %v766 = vunpack.c.h.b16 %v691
    %v767 = vunpack.c.l.b16 %v692
    %v768 = vunpack.c.h.b16 %v692
    %v769 = vunpack.c.l.b16 %v693
    %v770 = vunpack.c.h.b16 %v693
    %v771 = vunpack.c.l.b16 %v694
    %v772 = vunpack.c.h.b16 %v694
    %v773 = vunpack.c.l.b16 %v695
    %v774 = vunpack.c.h.b16 %v695
    %v775 = vunpack.c.l.b16 %v696
    %v776 = vunpack.c.h.b16 %v696
    %v777 = vunpack.c.l.b16 %v697
    %v778 = vunpack.c.h.b16 %v697
    %v779 = vunpack.c.l.b16 %v698
    %v780 = vunpack.c.h.b16 %v698
    %v781 = vunpack.c.l.b16 %v699
    %v782 = vunpack.c.h.b16 %v699
    %v783 = vunpack.c.l.b16 %v700
    %v784 = vunpack.c.h.b16 %v700
    %v785 = vunpack.c.l.b16 %v701
    %v786 = vunpack.c.h.b16 %v701
    %v787 = vunpack.c.l.b16 %v702
    %v788 = vunpack.c.h.b16 %v702
    %v789 = vunpack.c.l.b16 %v703
    %v790 = vunpack.c.h.b16 %v703
    %v791 = vunpack.c.l.b16 %v704
    %v792 = vunpack.c.h.b16 %v704
    %v793 = vunpack.c.l.b16 %v705
    %v794 = vunpack.c.h.b16 %v705
    %v795 = vunpack.c.l.b16 %v706
    %v796 = vunpack.c.h.b16 %v706
    %v797 = vunpack.c.l.b16 %v707
    %v798 = vunpack.c.h.b16 %v707
    %v799 = vunpack.c.l.b16 %v708
    %v800 = vunpack.c.h.b16 %v708
    %v801 = vunpack.c.l.b16 %v709
    %v802 = vunpack.c.h.b16 %v709
    %v803 = vunpack.c.l.b16 %v710
    %v804 = vunpack.c.h.b16 %v710
    %v805 = vunpack.c.l.b16 %v711
    %v806 = vunpack.c.h.b16 %v711
    %v807 = vunpack.c.l.b16 %v712
    %v808 = vunpack.c.h.b16 %v712
    %v809 = vpack.c.b16 %v749, %v745
    %v810 = vpack.c.b16 %v750, %v746
    %v811 = vpack.c.b16 %v751, %v747
    %v812 = vpack.c.b16 %v752, %v748
    %v813 = vpack.c.b16 %v757, %v753
    %v814 = vpack.c.b16 %v758, %v754
    %v815 = vpack.c.b16 %v759, %v755
    %v816 = vpack.c.b16 %v760, %v756
    %v817 = vpack.c.b16 %v765, %v761
    %v818 = vpack.c.b16 %v766, %v762
    %v819 = vpack.c.b16 %v767, %v763
    %v820 = vpack.c.b16 %v768, %v764
    %v821 = vpack.c.b16 %v773, %v769
    %v822 = vpack.c.b16 %v774, %v770
    %v823 = vpack.c.b16 %v775, %v771
    %v824 = vpack.c.b16 %v776, %v772
    %v825 = vpack.c.b16 %v781, %v777
    %v826 = vpack.c.b16 %v782, %v778
    %v827 = vpack.c.b16 %v783, %v779
    %v828 = vpack.c.b16 %v784, %v780
    %v829 = vpack.c.b16 %v789, %v785
    %v830 = vpack.c.b16 %v790, %v786
    %v831 = vpack.c.b16 %v791, %v787
    %v832 = vpack.c.b16 %v792, %v788
    %v833 = vpack.c.b16 %v797, %v793
    %v834 = vpack.c.b16 %v798, %v794
    %v835 = vpack.c.b16 %v799, %v795
    %v836 = vpack.c.b16 %v800, %v796
    %v837 = vpack.c.b16 %v805, %v801
    %v838 = vpack.c.b16 %v806, %v802
    %v839 = vpack.c.b16 %v807, %v803
    %v840 = vpack.c.b16 %v808, %v804
    %873 = vmatprep.subr.bf16.mxu0 %v810
    %874 = vmatpush1.bf16.msra.mxu0 %v809
    %875 = vmatprep.subr.bf16.mxu0 %v814
    %876 = vmatpush1.bf16.msra.mxu0 %v813
    %877 = vmatprep.subr.bf16.mxu0 %v818
    %878 = vmatpush1.bf16.msra.mxu0 %v817
    %879 = vmatprep.subr.bf16.mxu0 %v822
    %880 = vmatpush1.bf16.msra.mxu0 %v821
    %881 = vmatprep.subr.bf16.mxu0 %v826
    %882 = vmatpush1.bf16.msra.mxu0 %v825
    %883 = vmatprep.subr.bf16.mxu0 %v830
    %884 = vmatpush1.bf16.msra.mxu0 %v829
    %885 = vmatprep.subr.bf16.mxu0 %v834
    %886 = vmatpush1.bf16.msra.mxu0 %v833
    %887 = vmatprep.subr.bf16.mxu0 %v838
    %888 = vmatpush1.bf16.msra.mxu0 %v837
    %889 = vmatprep.subr.bf16.mxu0 0
    %890 = vmatpush1.bf16.msra.mxu0 0
    %891 = vmatprep.subr.bf16.mxu0 0
    %892 = vmatpush1.bf16.msra.mxu0 0
    %893 = vmatprep.subr.bf16.mxu0 0
    %894 = vmatpush1.bf16.msra.mxu0 0
    %895 = vmatprep.subr.bf16.mxu0 0
    %896 = vmatpush1.bf16.msra.mxu0 0
    %897 = vmatprep.subr.bf16.mxu0 0
    %898 = vmatpush1.bf16.msra.mxu0 0
    %899 = vmatprep.subr.bf16.mxu0 0
    %900 = vmatpush1.bf16.msra.mxu0 0
    %901 = vmatprep.subr.bf16.mxu0 0
    %902 = vmatpush1.bf16.msra.mxu0 0
    %903 = vmatprep.subr.bf16.mxu0 0
    %904 = vmatpush1.bf16.msra.mxu0 0
    %905 = vmatprep.mubr.bf16.mxu0 0
    %906 = vmatmul.mubr.bf16.gmra.mrb[0].mxu0 %v680
    %v907 = vpop.f32.mrb[0].mxu0
    %v908 = vadd.f32 0.0, %v907
    %v909 = vpop.f32.mrb[0].mxu0
    %v910 = vadd.f32 0.0, %v909
    %v911 = vpop.f32.mrb[0].mxu0
    %v912 = vpop.f32.mrb[0].mxu0
    %913 = vdwg.mxu0
    %914 = vmatprep.subr.bf16.mxu0 %v812
    %915 = vmatpush1.bf16.msra.mxu0 %v811
    %916 = vmatprep.subr.bf16.mxu0 %v816
    %917 = vmatpush1.bf16.msra.mxu0 %v815
    %918 = vmatprep.subr.bf16.mxu0 %v820
    %919 = vmatpush1.bf16.msra.mxu0 %v819
    %920 = vmatprep.subr.bf16.mxu0 %v824
    %921 = vmatpush1.bf16.msra.mxu0 %v823
    %922 = vmatprep.subr.bf16.mxu0 %v828
    %923 = vmatpush1.bf16.msra.mxu0 %v827
    %924 = vmatprep.subr.bf16.mxu0 %v832
    %925 = vmatpush1.bf16.msra.mxu0 %v831
    %926 = vmatprep.subr.bf16.mxu0 %v836
    %927 = vmatpush1.bf16.msra.mxu0 %v835
    %928 = vmatprep.subr.bf16.mxu0 %v840
    %929 = vmatpush1.bf16.msra.mxu0 %v839
    %930 = vmatprep.subr.bf16.mxu0 0
    %931 = vmatpush1.bf16.msra.mxu0 0
    %932 = vmatprep.subr.bf16.mxu0 0
    %933 = vmatpush1.bf16.msra.mxu0 0
    %934 = vmatprep.subr.bf16.mxu0 0
    %935 = vmatpush1.bf16.msra.mxu0 0
    %936 = vmatprep.subr.bf16.mxu0 0
    %937 = vmatpush1.bf16.msra.mxu0 0
    %938 = vmatprep.subr.bf16.mxu0 0
    %939 = vmatpush1.bf16.msra.mxu0 0
    %940 = vmatprep.subr.bf16.mxu0 0
    %941 = vmatpush1.bf16.msra.mxu0 0
    %942 = vmatprep.subr.bf16.mxu0 0
    %943 = vmatpush1.bf16.msra.mxu0 0
    %944 = vmatprep.subr.bf16.mxu0 0
    %945 = vmatpush1.bf16.msra.mxu0 0
    %946 = vmatprep.mubr.bf16.mxu0 0
    %947 = vmatmul.mubr.bf16.gmra.mrb[0].mxu0 %v680
    %v948 = vpop.f32.mrb[0].mxu0
    %v949 = vadd.f32 0.0, %v948
    %v950 = vpop.f32.mrb[0].mxu0
    %v951 = vadd.f32 0.0, %v950
    %v952 = vpop.f32.mrb[0].mxu0
    %v953 = vpop.f32.mrb[0].mxu0
    %954 = vdwg.mxu0
    %v959 = vrot.slane %v908, 4
    %v960 = vrot.slane %v910, 4
    %v961 = vrot.slane %v949, 4
    %v962 = vrot.slane %v951, 4
    %v967 = vadd.f32 %v676, %v959
    %v968 = vadd.f32 %v677, %v960
    %v969 = vadd.f32 %v678, %v961
    %v970 = vadd.f32 %v679, %v962
    %v971 = vmul.f32 %v967, 0.5
    %v972 = vtanh.pop %v971
    %v973 = vmul.f32 %v972, 0.5
    %v974 = vadd.f32 %v973, 0.5
    %v975 = vmul.f32 %v968, 0.5
    %v976 = vtanh.pop %v975
    %v977 = vmul.f32 %v976, 0.5
    %v978 = vadd.f32 %v977, 0.5
    %v979 = vtanh.pop %v969
    %v980 = vmul.f32 %v970, 0.5
    %v981 = vtanh.pop %v980
    %v982 = vmul.f32 %v981, 0.5
    %v983 = vadd.f32 %v982, 0.5
    %v985 = vrot.slane %v675, 4
    %v987 = vmul.f32 %v978, %v985
    %v988 = vmul.f32 %v974, %v979
    %v989 = vadd.f32 %v987, %v988
    %v990 = vtanh.pop %v989
    %v991 = vmul.f32 %v983, %v990
    %992 = vst [vmem:[#allocation3 - $0x4] sm:$0x30] %v989
    %993 = vst [vmem:[#allocation2 - $0x4] sm:$0x30] %v991
    %994 = vst [vmem:[#allocation9] sm:$0x30] %v991
    %v995 = vld [vmem:[#allocation2] sm:$0x3]
    %v996 = vld [vmem:[#allocation3] sm:$0x3]
    %v997 = vld [vmem:[#allocation4] sm:$0xc0]
    %v998 = vld [vmem:[#allocation4 + $0x8] sm:$0xc0]
    %v999 = vld [vmem:[#allocation4 + $0x10] sm:$0xc0]
    %v1000 = vld [vmem:[#allocation4 + $0x18] sm:$0xc0]
    %v1001 = vpack.c.bf16 %v995, %v995
    %v1002 = vld [vmem:[#allocation7] sm:$0xff]
    %v1003 = vld [vmem:[#allocation7 + $0x8] sm:$0xff]
    %v1004 = vld [vmem:[#allocation7 + $0x10] sm:$0xff]
    %v1005 = vld [vmem:[#allocation7 + $0x18] sm:$0xff]
    %v1006 = vld [vmem:[#allocation7 + $0x20] sm:$0xff]
    %v1007 = vld [vmem:[#allocation7 + $0x28] sm:$0xff]
    %v1008 = vld [vmem:[#allocation7 + $0x30] sm:$0xff]
    %v1009 = vld [vmem:[#allocation7 + $0x38] sm:$0xff]
    %v1010 = vld [vmem:[#allocation7 + $0x40] sm:$0xff]
    %v1011 = vld [vmem:[#allocation7 + $0x48] sm:$0xff]
    %v1012 = vld [vmem:[#allocation7 + $0x50] sm:$0xff]
    %v1013 = vld [vmem:[#allocation7 + $0x58] sm:$0xff]
    %v1014 = vld [vmem:[#allocation7 + $0x60] sm:$0xff]
    %v1015 = vld [vmem:[#allocation7 + $0x68] sm:$0xff]
    %v1016 = vld [vmem:[#allocation7 + $0x70] sm:$0xff]
    %v1017 = vld [vmem:[#allocation7 + $0x78] sm:$0xff]
    %v1018 = vld [vmem:[#allocation7 + $0x80] sm:$0xff]
    %v1019 = vld [vmem:[#allocation7 + $0x88] sm:$0xff]
    %v1020 = vld [vmem:[#allocation7 + $0x90] sm:$0xff]
    %v1021 = vld [vmem:[#allocation7 + $0x98] sm:$0xff]
    %v1022 = vld [vmem:[#allocation7 + $0xa0] sm:$0xff]
    %v1023 = vld [vmem:[#allocation7 + $0xa8] sm:$0xff]
    %v1024 = vld [vmem:[#allocation7 + $0xb0] sm:$0xff]
    %v1025 = vld [vmem:[#allocation7 + $0xb8] sm:$0xff]
    %v1026 = vld [vmem:[#allocation7 + $0xc0] sm:$0xff]
    %v1027 = vld [vmem:[#allocation7 + $0xc8] sm:$0xff]
    %v1028 = vld [vmem:[#allocation7 + $0xd0] sm:$0xff]
    %v1029 = vld [vmem:[#allocation7 + $0xd8] sm:$0xff]
    %v1030 = vld [vmem:[#allocation7 + $0xe0] sm:$0xff]
    %v1031 = vld [vmem:[#allocation7 + $0xe8] sm:$0xff]
    %v1032 = vld [vmem:[#allocation7 + $0xf0] sm:$0xff]
    %v1033 = vld [vmem:[#allocation7 + $0xf8] sm:$0xff]
    %v1066 = vunpack.c.l.b16 %v1002
    %v1067 = vunpack.c.h.b16 %v1002
    %v1068 = vunpack.c.l.b16 %v1003
    %v1069 = vunpack.c.h.b16 %v1003
    %v1070 = vunpack.c.l.b16 %v1004
    %v1071 = vunpack.c.h.b16 %v1004
    %v1072 = vunpack.c.l.b16 %v1005
    %v1073 = vunpack.c.h.b16 %v1005
    %v1074 = vunpack.c.l.b16 %v1006
    %v1075 = vunpack.c.h.b16 %v1006
    %v1076 = vunpack.c.l.b16 %v1007
    %v1077 = vunpack.c.h.b16 %v1007
    %v1078 = vunpack.c.l.b16 %v1008
    %v1079 = vunpack.c.h.b16 %v1008
    %v1080 = vunpack.c.l.b16 %v1009
    %v1081 = vunpack.c.h.b16 %v1009
    %v1082 = vunpack.c.l.b16 %v1010
    %v1083 = vunpack.c.h.b16 %v1010
    %v1084 = vunpack.c.l.b16 %v1011
    %v1085 = vunpack.c.h.b16 %v1011
    %v1086 = vunpack.c.l.b16 %v1012
    %v1087 = vunpack.c.h.b16 %v1012
    %v1088 = vunpack.c.l.b16 %v1013
    %v1089 = vunpack.c.h.b16 %v1013
    %v1090 = vunpack.c.l.b16 %v1014
    %v1091 = vunpack.c.h.b16 %v1014
    %v1092 = vunpack.c.l.b16 %v1015
    %v1093 = vunpack.c.h.b16 %v1015
    %v1094 = vunpack.c.l.b16 %v1016
    %v1095 = vunpack.c.h.b16 %v1016
    %v1096 = vunpack.c.l.b16 %v1017
    %v1097 = vunpack.c.h.b16 %v1017
    %v1098 = vunpack.c.l.b16 %v1018
    %v1099 = vunpack.c.h.b16 %v1018
    %v1100 = vunpack.c.l.b16 %v1019
    %v1101 = vunpack.c.h.b16 %v1019
    %v1102 = vunpack.c.l.b16 %v1020
    %v1103 = vunpack.c.h.b16 %v1020
    %v1104 = vunpack.c.l.b16 %v1021
    %v1105 = vunpack.c.h.b16 %v1021
    %v1106 = vunpack.c.l.b16 %v1022
    %v1107 = vunpack.c.h.b16 %v1022
    %v1108 = vunpack.c.l.b16 %v1023
    %v1109 = vunpack.c.h.b16 %v1023
    %v1110 = vunpack.c.l.b16 %v1024
    %v1111 = vunpack.c.h.b16 %v1024
    %v1112 = vunpack.c.l.b16 %v1025
    %v1113 = vunpack.c.h.b16 %v1025
    %v1114 = vunpack.c.l.b16 %v1026
    %v1115 = vunpack.c.h.b16 %v1026
    %v1116 = vunpack.c.l.b16 %v1027
    %v1117 = vunpack.c.h.b16 %v1027
    %v1118 = vunpack.c.l.b16 %v1028
    %v1119 = vunpack.c.h.b16 %v1028
    %v1120 = vunpack.c.l.b16 %v1029
    %v1121 = vunpack.c.h.b16 %v1029
    %v1122 = vunpack.c.l.b16 %v1030
    %v1123 = vunpack.c.h.b16 %v1030
    %v1124 = vunpack.c.l.b16 %v1031
    %v1125 = vunpack.c.h.b16 %v1031
    %v1126 = vunpack.c.l.b16 %v1032
    %v1127 = vunpack.c.h.b16 %v1032
    %v1128 = vunpack.c.l.b16 %v1033
    %v1129 = vunpack.c.h.b16 %v1033
    %v1130 = vpack.c.b16 %v1070, %v1066
    %v1131 = vpack.c.b16 %v1071, %v1067
    %v1132 = vpack.c.b16 %v1072, %v1068
    %v1133 = vpack.c.b16 %v1073, %v1069
    %v1134 = vpack.c.b16 %v1078, %v1074
    %v1135 = vpack.c.b16 %v1079, %v1075
    %v1136 = vpack.c.b16 %v1080, %v1076
    %v1137 = vpack.c.b16 %v1081, %v1077
    %v1138 = vpack.c.b16 %v1086, %v1082
    %v1139 = vpack.c.b16 %v1087, %v1083
    %v1140 = vpack.c.b16 %v1088, %v1084
    %v1141 = vpack.c.b16 %v1089, %v1085
    %v1142 = vpack.c.b16 %v1094, %v1090
    %v1143 = vpack.c.b16 %v1095, %v1091
    %v1144 = vpack.c.b16 %v1096, %v1092
    %v1145 = vpack.c.b16 %v1097, %v1093
    %v1146 = vpack.c.b16 %v1102, %v1098
    %v1147 = vpack.c.b16 %v1103, %v1099
    %v1148 = vpack.c.b16 %v1104, %v1100
    %v1149 = vpack.c.b16 %v1105, %v1101
    %v1150 = vpack.c.b16 %v1110, %v1106
    %v1151 = vpack.c.b16 %v1111, %v1107
    %v1152 = vpack.c.b16 %v1112, %v1108
    %v1153 = vpack.c.b16 %v1113, %v1109
    %v1154 = vpack.c.b16 %v1118, %v1114
    %v1155 = vpack.c.b16 %v1119, %v1115
    %v1156 = vpack.c.b16 %v1120, %v1116
    %v1157 = vpack.c.b16 %v1121, %v1117
    %v1158 = vpack.c.b16 %v1126, %v1122
    %v1159 = vpack.c.b16 %v1127, %v1123
    %v1160 = vpack.c.b16 %v1128, %v1124
    %v1161 = vpack.c.b16 %v1129, %v1125
    %1194 = vmatprep.subr.bf16.mxu0 %v1131
    %1195 = vmatpush1.bf16.msra.mxu0 %v1130
    %1196 = vmatprep.subr.bf16.mxu0 %v1135
    %1197 = vmatpush1.bf16.msra.mxu0 %v1134
    %1198 = vmatprep.subr.bf16.mxu0 %v1139
    %1199 = vmatpush1.bf16.msra.mxu0 %v1138
    %1200 = vmatprep.subr.bf16.mxu0 %v1143
    %1201 = vmatpush1.bf16.msra.mxu0 %v1142
    %1202 = vmatprep.subr.bf16.mxu0 %v1147
    %1203 = vmatpush1.bf16.msra.mxu0 %v1146
    %1204 = vmatprep.subr.bf16.mxu0 %v1151
    %1205 = vmatpush1.bf16.msra.mxu0 %v1150
    %1206 = vmatprep.subr.bf16.mxu0 %v1155
    %1207 = vmatpush1.bf16.msra.mxu0 %v1154
    %1208 = vmatprep.subr.bf16.mxu0 %v1159
    %1209 = vmatpush1.bf16.msra.mxu0 %v1158
    %1210 = vmatprep.subr.bf16.mxu0 0
    %1211 = vmatpush1.bf16.msra.mxu0 0
    %1212 = vmatprep.subr.bf16.mxu0 0
    %1213 = vmatpush1.bf16.msra.mxu0 0
    %1214 = vmatprep.subr.bf16.mxu0 0
    %1215 = vmatpush1.bf16.msra.mxu0 0
    %1216 = vmatprep.subr.bf16.mxu0 0
    %1217 = vmatpush1.bf16.msra.mxu0 0
    %1218 = vmatprep.subr.bf16.mxu0 0
    %1219 = vmatpush1.bf16.msra.mxu0 0
    %1220 = vmatprep.subr.bf16.mxu0 0
    %1221 = vmatpush1.bf16.msra.mxu0 0
    %1222 = vmatprep.subr.bf16.mxu0 0
    %1223 = vmatpush1.bf16.msra.mxu0 0
    %1224 = vmatprep.subr.bf16.mxu0 0
    %1225 = vmatpush1.bf16.msra.mxu0 0
    %1226 = vmatprep.mubr.bf16.mxu0 0
    %1227 = vmatmul.mubr.bf16.gmra.mrb[0].mxu0 %v1001
    %v1228 = vpop.f32.mrb[0].mxu0
    %v1229 = vadd.f32 0.0, %v1228
    %v1230 = vpop.f32.mrb[0].mxu0
    %v1231 = vadd.f32 0.0, %v1230
    %v1232 = vpop.f32.mrb[0].mxu0
    %v1233 = vpop.f32.mrb[0].mxu0
    %1234 = vdwg.mxu0
    %1235 = vmatprep.subr.bf16.mxu0 %v1133
    %1236 = vmatpush1.bf16.msra.mxu0 %v1132
    %1237 = vmatprep.subr.bf16.mxu0 %v1137
    %1238 = vmatpush1.bf16.msra.mxu0 %v1136
    %1239 = vmatprep.subr.bf16.mxu0 %v1141
    %1240 = vmatpush1.bf16.msra.mxu0 %v1140
    %1241 = vmatprep.subr.bf16.mxu0 %v1145
    %1242 = vmatpush1.bf16.msra.mxu0 %v1144
    %1243 = vmatprep.subr.bf16.mxu0 %v1149
    %1244 = vmatpush1.bf16.msra.mxu0 %v1148
    %1245 = vmatprep.subr.bf16.mxu0 %v1153
    %1246 = vmatpush1.bf16.msra.mxu0 %v1152
    %1247 = vmatprep.subr.bf16.mxu0 %v1157
    %1248 = vmatpush1.bf16.msra.mxu0 %v1156
    %1249 = vmatprep.subr.bf16.mxu0 %v1161
    %1250 = vmatpush1.bf16.msra.mxu0 %v1160
    %1251 = vmatprep.subr.bf16.mxu0 0
    %1252 = vmatpush1.bf16.msra.mxu0 0
    %1253 = vmatprep.subr.bf16.mxu0 0
    %1254 = vmatpush1.bf16.msra.mxu0 0
    %1255 = vmatprep.subr.bf16.mxu0 0
    %1256 = vmatpush1.bf16.msra.mxu0 0
    %1257 = vmatprep.subr.bf16.mxu0 0
    %1258 = vmatpush1.bf16.msra.mxu0 0
    %1259 = vmatprep.subr.bf16.mxu0 0
    %1260 = vmatpush1.bf16.msra.mxu0 0
    %1261 = vmatprep.subr.bf16.mxu0 0
    %1262 = vmatpush1.bf16.msra.mxu0 0
    %1263 = vmatprep.subr.bf16.mxu0 0
    %1264 = vmatpush1.bf16.msra.mxu0 0
    %1265 = vmatprep.subr.bf16.mxu0 0
    %1266 = vmatpush1.bf16.msra.mxu0 0
    %1267 = vmatprep.mubr.bf16.mxu0 0
    %1268 = vmatmul.mubr.bf16.gmra.mrb[0].mxu0 %v1001
    %v1269 = vpop.f32.mrb[0].mxu0
    %v1270 = vadd.f32 0.0, %v1269
    %v1271 = vpop.f32.mrb[0].mxu0
    %v1272 = vadd.f32 0.0, %v1271
    %v1273 = vpop.f32.mrb[0].mxu0
    %v1274 = vpop.f32.mrb[0].mxu0
    %1275 = vdwg.mxu0
    %v1280 = vrot.slane %v1229, 2
    %v1281 = vrot.slane %v1231, 2
    %v1282 = vrot.slane %v1270, 2
    %v1283 = vrot.slane %v1272, 2
    %v1288 = vadd.f32 %v997, %v1280
    %v1289 = vadd.f32 %v998, %v1281
    %v1290 = vadd.f32 %v999, %v1282
    %v1291 = vadd.f32 %v1000, %v1283
    %v1292 = vmul.f32 %v1288, 0.5
    %v1293 = vtanh.pop %v1292
    %v1294 = vmul.f32 %v1293, 0.5
    %v1295 = vadd.f32 %v1294, 0.5
    %v1296 = vmul.f32 %v1289, 0.5
    %v1297 = vtanh.pop %v1296
    %v1298 = vmul.f32 %v1297, 0.5
    %v1299 = vadd.f32 %v1298, 0.5
    %v1300 = vtanh.pop %v1290
    %v1301 = vmul.f32 %v1291, 0.5
    %v1302 = vtanh.pop %v1301
    %v1303 = vmul.f32 %v1302, 0.5
    %v1304 = vadd.f32 %v1303, 0.5
    %v1306 = vrot.slane %v996, 2
    %v1308 = vmul.f32 %v1299, %v1306
    %v1309 = vmul.f32 %v1295, %v1300
    %v1310 = vadd.f32 %v1308, %v1309
    %v1311 = vtanh.pop %v1310
    %v1312 = vmul.f32 %v1304, %v1311
    %1313 = vst [vmem:[#allocation3 - $0x6] sm:$0xc0] %v1310
    %1314 = vst [vmem:[#allocation2 - $0x6] sm:$0xc0] %v1312
    %1315 = vst [vmem:[#allocation9] sm:$0xc0] %v1312
    %v1316 = vld [vmem:[#allocation2] sm:$0x3]
    %v1317 = vld [vmem:[#allocation3] sm:$0x3]
    %v1318 = vld [vmem:[#allocation4 + $0x20] sm:$0x3]
    %v1319 = vld [vmem:[#allocation4 + $0x28] sm:$0x3]
    %v1320 = vld [vmem:[#allocation4 + $0x30] sm:$0x3]
    %v1321 = vld [vmem:[#allocation4 + $0x38] sm:$0x3]
    %v1322 = vpack.c.bf16 %v1316, %v1316
    %v1323 = vld [vmem:[#allocation7] sm:$0xff]
    %v1324 = vld [vmem:[#allocation7 + $0x8] sm:$0xff]
    %v1325 = vld [vmem:[#allocation7 + $0x10] sm:$0xff]
    %v1326 = vld [vmem:[#allocation7 + $0x18] sm:$0xff]
    %v1327 = vld [vmem:[#allocation7 + $0x20] sm:$0xff]
    %v1328 = vld [vmem:[#allocation7 + $0x28] sm:$0xff]
    %v1329 = vld [vmem:[#allocation7 + $0x30] sm:$0xff]
    %v1330 = vld [vmem:[#allocation7 + $0x38] sm:$0xff]
    %v1331 = vld [vmem:[#allocation7 + $0x40] sm:$0xff]
    %v1332 = vld [vmem:[#allocation7 + $0x48] sm:$0xff]
    %v1333 = vld [vmem:[#allocation7 + $0x50] sm:$0xff]
    %v1334 = vld [vmem:[#allocation7 + $0x58] sm:$0xff]
    %v1335 = vld [vmem:[#allocation7 + $0x60] sm:$0xff]
    %v1336 = vld [vmem:[#allocation7 + $0x68] sm:$0xff]
    %v1337 = vld [vmem:[#allocation7 + $0x70] sm:$0xff]
    %v1338 = vld [vmem:[#allocation7 + $0x78] sm:$0xff]
    %v1339 = vld [vmem:[#allocation7 + $0x80] sm:$0xff]
    %v1340 = vld [vmem:[#allocation7 + $0x88] sm:$0xff]
    %v1341 = vld [vmem:[#allocation7 + $0x90] sm:$0xff]
    %v1342 = vld [vmem:[#allocation7 + $0x98] sm:$0xff]
    %v1343 = vld [vmem:[#allocation7 + $0xa0] sm:$0xff]
    %v1344 = vld [vmem:[#allocation7 + $0xa8] sm:$0xff]
    %v1345 = vld [vmem:[#allocation7 + $0xb0] sm:$0xff]
    %v1346 = vld [vmem:[#allocation7 + $0xb8] sm:$0xff]
    %v1347 = vld [vmem:[#allocation7 + $0xc0] sm:$0xff]
    %v1348 = vld [vmem:[#allocation7 + $0xc8] sm:$0xff]
    %v1349 = vld [vmem:[#allocation7 + $0xd0] sm:$0xff]
    %v1350 = vld [vmem:[#allocation7 + $0xd8] sm:$0xff]
    %v1351 = vld [vmem:[#allocation7 + $0xe0] sm:$0xff]
    %v1352 = vld [vmem:[#allocation7 + $0xe8] sm:$0xff]
    %v1353 = vld [vmem:[#allocation7 + $0xf0] sm:$0xff]
    %v1354 = vld [vmem:[#allocation7 + $0xf8] sm:$0xff]
    %v1387 = vunpack.c.l.b16 %v1323
    %v1388 = vunpack.c.h.b16 %v1323
    %v1389 = vunpack.c.l.b16 %v1324
    %v1390 = vunpack.c.h.b16 %v1324
    %v1391 = vunpack.c.l.b16 %v1325
    %v1392 = vunpack.c.h.b16 %v1325
    %v1393 = vunpack.c.l.b16 %v1326
    %v1394 = vunpack.c.h.b16 %v1326
    %v1395 = vunpack.c.l.b16 %v1327
    %v1396 = vunpack.c.h.b16 %v1327
    %v1397 = vunpack.c.l.b16 %v1328
    %v1398 = vunpack.c.h.b16 %v1328
    %v1399 = vunpack.c.l.b16 %v1329
    %v1400 = vunpack.c.h.b16 %v1329
    %v1401 = vunpack.c.l.b16 %v1330
    %v1402 = vunpack.c.h.b16 %v1330
    %v1403 = vunpack.c.l.b16 %v1331
    %v1404 = vunpack.c.h.b16 %v1331
    %v1405 = vunpack.c.l.b16 %v1332
    %v1406 = vunpack.c.h.b16 %v1332
    %v1407 = vunpack.c.l.b16 %v1333
    %v1408 = vunpack.c.h.b16 %v1333
    %v1409 = vunpack.c.l.b16 %v1334
    %v1410 = vunpack.c.h.b16 %v1334
    %v1411 = vunpack.c.l.b16 %v1335
    %v1412 = vunpack.c.h.b16 %v1335
    %v1413 = vunpack.c.l.b16 %v1336
    %v1414 = vunpack.c.h.b16 %v1336
    %v1415 = vunpack.c.l.b16 %v1337
    %v1416 = vunpack.c.h.b16 %v1337
    %v1417 = vunpack.c.l.b16 %v1338
    %v1418 = vunpack.c.h.b16 %v1338
    %v1419 = vunpack.c.l.b16 %v1339
    %v1420 = vunpack.c.h.b16 %v1339
    %v1421 = vunpack.c.l.b16 %v1340
    %v1422 = vunpack.c.h.b16 %v1340
    %v1423 = vunpack.c.l.b16 %v1341
    %v1424 = vunpack.c.h.b16 %v1341
    %v1425 = vunpack.c.l.b16 %v1342
    %v1426 = vunpack.c.h.b16 %v1342
    %v1427 = vunpack.c.l.b16 %v1343
    %v1428 = vunpack.c.h.b16 %v1343
    %v1429 = vunpack.c.l.b16 %v1344
    %v1430 = vunpack.c.h.b16 %v1344
    %v1431 = vunpack.c.l.b16 %v1345
    %v1432 = vunpack.c.h.b16 %v1345
    %v1433 = vunpack.c.l.b16 %v1346
    %v1434 = vunpack.c.h.b16 %v1346
    %v1435 = vunpack.c.l.b16 %v1347
    %v1436 = vunpack.c.h.b16 %v1347
    %v1437 = vunpack.c.l.b16 %v1348
    %v1438 = vunpack.c.h.b16 %v1348
    %v1439 = vunpack.c.l.b16 %v1349
    %v1440 = vunpack.c.h.b16 %v1349
    %v1441 = vunpack.c.l.b16 %v1350
    %v1442 = vunpack.c.h.b16 %v1350
    %v1443 = vunpack.c.l.b16 %v1351
    %v1444 = vunpack.c.h.b16 %v1351
    %v1445 = vunpack.c.l.b16 %v1352
    %v1446 = vunpack.c.h.b16 %v1352
    %v1447 = vunpack.c.l.b16 %v1353
    %v1448 = vunpack.c.h.b16 %v1353
    %v1449 = vunpack.c.l.b16 %v1354
    %v1450 = vunpack.c.h.b16 %v1354
    %v1451 = vpack.c.b16 %v1391, %v1387
    %v1452 = vpack.c.b16 %v1392, %v1388
    %v1453 = vpack.c.b16 %v1393, %v1389
    %v1454 = vpack.c.b16 %v1394, %v1390
    %v1455 = vpack.c.b16 %v1399, %v1395
    %v1456 = vpack.c.b16 %v1400, %v1396
    %v1457 = vpack.c.b16 %v1401, %v1397
    %v1458 = vpack.c.b16 %v1402, %v1398
    %v1459 = vpack.c.b16 %v1407, %v1403
    %v1460 = vpack.c.b16 %v1408, %v1404
    %v1461 = vpack.c.b16 %v1409, %v1405
    %v1462 = vpack.c.b16 %v1410, %v1406
    %v1463 = vpack.c.b16 %v1415, %v1411
    %v1464 = vpack.c.b16 %v1416, %v1412
    %v1465 = vpack.c.b16 %v1417, %v1413
    %v1466 = vpack.c.b16 %v1418, %v1414
    %v1467 = vpack.c.b16 %v1423, %v1419
    %v1468 = vpack.c.b16 %v1424, %v1420
    %v1469 = vpack.c.b16 %v1425, %v1421
    %v1470 = vpack.c.b16 %v1426, %v1422
    %v1471 = vpack.c.b16 %v1431, %v1427
    %v1472 = vpack.c.b16 %v1432, %v1428
    %v1473 = vpack.c.b16 %v1433, %v1429
    %v1474 = vpack.c.b16 %v1434, %v1430
    %v1475 = vpack.c.b16 %v1439, %v1435
    %v1476 = vpack.c.b16 %v1440, %v1436
    %v1477 = vpack.c.b16 %v1441, %v1437
    %v1478 = vpack.c.b16 %v1442, %v1438
    %v1479 = vpack.c.b16 %v1447, %v1443
    %v1480 = vpack.c.b16 %v1448, %v1444
    %v1481 = vpack.c.b16 %v1449, %v1445
    %v1482 = vpack.c.b16 %v1450, %v1446
    %1515 = vmatprep.subr.bf16.mxu0 %v1452
    %1516 = vmatpush1.bf16.msra.mxu0 %v1451
    %1517 = vmatprep.subr.bf16.mxu0 %v1456
    %1518 = vmatpush1.bf16.msra.mxu0 %v1455
    %1519 = vmatprep.subr.bf16.mxu0 %v1460
    %1520 = vmatpush1.bf16.msra.mxu0 %v1459
    %1521 = vmatprep.subr.bf16.mxu0 %v1464
    %1522 = vmatpush1.bf16.msra.mxu0 %v1463
    %1523 = vmatprep.subr.bf16.mxu0 %v1468
    %1524 = vmatpush1.bf16.msra.mxu0 %v1467
    %1525 = vmatprep.subr.bf16.mxu0 %v1472
    %1526 = vmatpush1.bf16.msra.mxu0 %v1471
    %1527 = vmatprep.subr.bf16.mxu0 %v1476
    %1528 = vmatpush1.bf16.msra.mxu0 %v1475
    %1529 = vmatprep.subr.bf16.mxu0 %v1480
    %1530 = vmatpush1.bf16.msra.mxu0 %v1479
    %1531 = vmatprep.subr.bf16.mxu0 0
    %1532 = vmatpush1.bf16.msra.mxu0 0
    %1533 = vmatprep.subr.bf16.mxu0 0
    %1534 = vmatpush1.bf16.msra.mxu0 0
    %1535 = vmatprep.subr.bf16.mxu0 0
    %1536 = vmatpush1.bf16.msra.mxu0 0
    %1537 = vmatprep.subr.bf16.mxu0 0
    %1538 = vmatpush1.bf16.msra.mxu0 0
    %1539 = vmatprep.subr.bf16.mxu0 0
    %1540 = vmatpush1.bf16.msra.mxu0 0
    %1541 = vmatprep.subr.bf16.mxu0 0
    %1542 = vmatpush1.bf16.msra.mxu0 0
    %1543 = vmatprep.subr.bf16.mxu0 0
    %1544 = vmatpush1.bf16.msra.mxu0 0
    %1545 = vmatprep.subr.bf16.mxu0 0
    %1546 = vmatpush1.bf16.msra.mxu0 0
    %1547 = vmatprep.mubr.bf16.mxu0 0
    %1548 = vmatmul.mubr.bf16.gmra.mrb[0].mxu0 %v1322
    %v1549 = vpop.f32.mrb[0].mxu0
    %v1550 = vadd.f32 0.0, %v1549
    %v1551 = vpop.f32.mrb[0].mxu0
    %v1552 = vadd.f32 0.0, %v1551
    %v1553 = vpop.f32.mrb[0].mxu0
    %v1554 = vpop.f32.mrb[0].mxu0
    %1555 = vdwg.mxu0
    %1556 = vmatprep.subr.bf16.mxu0 %v1454
    %1557 = vmatpush1.bf16.msra.mxu0 %v1453
    %1558 = vmatprep.subr.bf16.mxu0 %v1458
    %1559 = vmatpush1.bf16.msra.mxu0 %v1457
    %1560 = vmatprep.subr.bf16.mxu0 %v1462
    %1561 = vmatpush1.bf16.msra.mxu0 %v1461
    %1562 = vmatprep.subr.bf16.mxu0 %v1466
    %1563 = vmatpush1.bf16.msra.mxu0 %v1465
    %1564 = vmatprep.subr.bf16.mxu0 %v1470
    %1565 = vmatpush1.bf16.msra.mxu0 %v1469
    %1566 = vmatprep.subr.bf16.mxu0 %v1474
    %1567 = vmatpush1.bf16.msra.mxu0 %v1473
    %1568 = vmatprep.subr.bf16.mxu0 %v1478
    %1569 = vmatpush1.bf16.msra.mxu0 %v1477
    %1570 = vmatprep.subr.bf16.mxu0 %v1482
    %1571 = vmatpush1.bf16.msra.mxu0 %v1481
    %1572 = vmatprep.subr.bf16.mxu0 0
    %1573 = vmatpush1.bf16.msra.mxu0 0
    %1574 = vmatprep.subr.bf16.mxu0 0
    %1575 = vmatpush1.bf16.msra.mxu0 0
    %1576 = vmatprep.subr.bf16.mxu0 0
    %1577 = vmatpush1.bf16.msra.mxu0 0
    %1578 = vmatprep.subr.bf16.mxu0 0
    %1579 = vmatpush1.bf16.msra.mxu0 0
    %1580 = vmatprep.subr.bf16.mxu0 0
    %1581 = vmatpush1.bf16.msra.mxu0 0
    %1582 = vmatprep.subr.bf16.mxu0 0
    %1583 = vmatpush1.bf16.msra.mxu0 0
    %1584 = vmatprep.subr.bf16.mxu0 0
    %1585 = vmatpush1.bf16.msra.mxu0 0
    %1586 = vmatprep.subr.bf16.mxu0 0
    %1587 = vmatpush1.bf16.msra.mxu0 0
    %1588 = vmatprep.mubr.bf16.mxu0 0
    %1589 = vmatmul.mubr.bf16.gmra.mrb[0].mxu0 %v1322
    %v1590 = vpop.f32.mrb[0].mxu0
    %v1591 = vadd.f32 0.0, %v1590
    %v1592 = vpop.f32.mrb[0].mxu0
    %v1593 = vadd.f32 0.0, %v1592
    %v1594 = vpop.f32.mrb[0].mxu0
    %v1595 = vpop.f32.mrb[0].mxu0
    %1596 = vdwg.mxu0
    %v1597 = vadd.f32 %v1318, %v1550
    %v1598 = vadd.f32 %v1319, %v1552
    %v1599 = vadd.f32 %v1320, %v1591
    %v1600 = vadd.f32 %v1321, %v1593
    %v1601 = vmul.f32 %v1597, 0.5
    %v1602 = vtanh.pop %v1601
    %v1603 = vmul.f32 %v1602, 0.5
    %v1604 = vadd.f32 %v1603, 0.5
    %v1605 = vmul.f32 %v1598, 0.5
    %v1606 = vtanh.pop %v1605
    %v1607 = vmul.f32 %v1606, 0.5
    %v1608 = vadd.f32 %v1607, 0.5
    %v1609 = vtanh.pop %v1599
    %v1610 = vmul.f32 %v1600, 0.5
    %v1611 = vtanh.pop %v1610
    %v1612 = vmul.f32 %v1611, 0.5
    %v1613 = vadd.f32 %v1612, 0.5
    %v1614 = vmul.f32 %v1608, %v1317
    %v1615 = vmul.f32 %v1604, %v1609
    %v1616 = vadd.f32 %v1614, %v1615
    %v1617 = vtanh.pop %v1616
    %v1618 = vmul.f32 %v1613, %v1617
    %1619 = vst [vmem:[#allocation3] sm:$0x3] %v1616
    %1620 = vst [vmem:[#allocation2] sm:$0x3] %v1618
    %1621 = vst [vmem:[#allocation9 + $0x8] sm:$0x3] %v1618
    %v1622 = vld [vmem:[#allocation2] sm:$0x3]
    %v1623 = vld [vmem:[#allocation3] sm:$0x3]
    %v1624 = vld [vmem:[#allocation4 + $0x20] sm:$0xc]
    %v1625 = vld [vmem:[#allocation4 + $0x28] sm:$0xc]
    %v1626 = vld [vmem:[#allocation4 + $0x30] sm:$0xc]
    %v1627 = vld [vmem:[#allocation4 + $0x38] sm:$0xc]
    %v1628 = vpack.c.bf16 %v1622, %v1622
    %v1629 = vld [vmem:[#allocation7] sm:$0xff]
    %v1630 = vld [vmem:[#allocation7 + $0x8] sm:$0xff]
    %v1631 = vld [vmem:[#allocation7 + $0x10] sm:$0xff]
    %v1632 = vld [vmem:[#allocation7 + $0x18] sm:$0xff]
    %v1633 = vld [vmem:[#allocation7 + $0x20] sm:$0xff]
    %v1634 = vld [vmem:[#allocation7 + $0x28] sm:$0xff]
    %v1635 = vld [vmem:[#allocation7 + $0x30] sm:$0xff]
    %v1636 = vld [vmem:[#allocation7 + $0x38] sm:$0xff]
    %v1637 = vld [vmem:[#allocation7 + $0x40] sm:$0xff]
    %v1638 = vld [vmem:[#allocation7 + $0x48] sm:$0xff]
    %v1639 = vld [vmem:[#allocation7 + $0x50] sm:$0xff]
    %v1640 = vld [vmem:[#allocation7 + $0x58] sm:$0xff]
    %v1641 = vld [vmem:[#allocation7 + $0x60] sm:$0xff]
    %v1642 = vld [vmem:[#allocation7 + $0x68] sm:$0xff]
    %v1643 = vld [vmem:[#allocation7 + $0x70] sm:$0xff]
    %v1644 = vld [vmem:[#allocation7 + $0x78] sm:$0xff]
    %v1645 = vld [vmem:[#allocation7 + $0x80] sm:$0xff]
    %v1646 = vld [vmem:[#allocation7 + $0x88] sm:$0xff]
    %v1647 = vld [vmem:[#allocation7 + $0x90] sm:$0xff]
    %v1648 = vld [vmem:[#allocation7 + $0x98] sm:$0xff]
    %v1649 = vld [vmem:[#allocation7 + $0xa0] sm:$0xff]
    %v1650 = vld [vmem:[#allocation7 + $0xa8] sm:$0xff]
    %v1651 = vld [vmem:[#allocation7 + $0xb0] sm:$0xff]
    %v1652 = vld [vmem:[#allocation7 + $0xb8] sm:$0xff]
    %v1653 = vld [vmem:[#allocation7 + $0xc0] sm:$0xff]
    %v1654 = vld [vmem:[#allocation7 + $0xc8] sm:$0xff]
    %v1655 = vld [vmem:[#allocation7 + $0xd0] sm:$0xff]
    %v1656 = vld [vmem:[#allocation7 + $0xd8] sm:$0xff]
    %v1657 = vld [vmem:[#allocation7 + $0xe0] sm:$0xff]
    %v1658 = vld [vmem:[#allocation7 + $0xe8] sm:$0xff]
    %v1659 = vld [vmem:[#allocation7 + $0xf0] sm:$0xff]
    %v1660 = vld [vmem:[#allocation7 + $0xf8] sm:$0xff]
    %v1693 = vunpack.c.l.b16 %v1629
    %v1694 = vunpack.c.h.b16 %v1629
    %v1695 = vunpack.c.l.b16 %v1630
    %v1696 = vunpack.c.h.b16 %v1630
    %v1697 = vunpack.c.l.b16 %v1631
    %v1698 = vunpack.c.h.b16 %v1631
    %v1699 = vunpack.c.l.b16 %v1632
    %v1700 = vunpack.c.h.b16 %v1632
    %v1701 = vunpack.c.l.b16 %v1633
    %v1702 = vunpack.c.h.b16 %v1633
    %v1703 = vunpack.c.l.b16 %v1634
    %v1704 = vunpack.c.h.b16 %v1634
    %v1705 = vunpack.c.l.b16 %v1635
    %v1706 = vunpack.c.h.b16 %v1635
    %v1707 = vunpack.c.l.b16 %v1636
    %v1708 = vunpack.c.h.b16 %v1636
    %v1709 = vunpack.c.l.b16 %v1637
    %v1710 = vunpack.c.h.b16 %v1637
    %v1711 = vunpack.c.l.b16 %v1638
    %v1712 = vunpack.c.h.b16 %v1638
    %v1713 = vunpack.c.l.b16 %v1639
    %v1714 = vunpack.c.h.b16 %v1639
    %v1715 = vunpack.c.l.b16 %v1640
    %v1716 = vunpack.c.h.b16 %v1640
    %v1717 = vunpack.c.l.b16 %v1641
    %v1718 = vunpack.c.h.b16 %v1641
    %v1719 = vunpack.c.l.b16 %v1642
    %v1720 = vunpack.c.h.b16 %v1642
    %v1721 = vunpack.c.l.b16 %v1643
    %v1722 = vunpack.c.h.b16 %v1643
    %v1723 = vunpack.c.l.b16 %v1644
    %v1724 = vunpack.c.h.b16 %v1644
    %v1725 = vunpack.c.l.b16 %v1645
    %v1726 = vunpack.c.h.b16 %v1645
    %v1727 = vunpack.c.l.b16 %v1646
    %v1728 = vunpack.c.h.b16 %v1646
    %v1729 = vunpack.c.l.b16 %v1647
    %v1730 = vunpack.c.h.b16 %v1647
    %v1731 = vunpack.c.l.b16 %v1648
    %v1732 = vunpack.c.h.b16 %v1648
    %v1733 = vunpack.c.l.b16 %v1649
    %v1734 = vunpack.c.h.b16 %v1649
    %v1735 = vunpack.c.l.b16 %v1650
    %v1736 = vunpack.c.h.b16 %v1650
    %v1737 = vunpack.c.l.b16 %v1651
    %v1738 = vunpack.c.h.b16 %v1651
    %v1739 = vunpack.c.l.b16 %v1652
    %v1740 = vunpack.c.h.b16 %v1652
    %v1741 = vunpack.c.l.b16 %v1653
    %v1742 = vunpack.c.h.b16 %v1653
    %v1743 = vunpack.c.l.b16 %v1654
    %v1744 = vunpack.c.h.b16 %v1654
    %v1745 = vunpack.c.l.b16 %v1655
    %v1746 = vunpack.c.h.b16 %v1655
    %v1747 = vunpack.c.l.b16 %v1656
    %v1748 = vunpack.c.h.b16 %v1656
    %v1749 = vunpack.c.l.b16 %v1657
    %v1750 = vunpack.c.h.b16 %v1657
    %v1751 = vunpack.c.l.b16 %v1658
    %v1752 = vunpack.c.h.b16 %v1658
    %v1753 = vunpack.c.l.b16 %v1659
    %v1754 = vunpack.c.h.b16 %v1659
    %v1755 = vunpack.c.l.b16 %v1660
    %v1756 = vunpack.c.h.b16 %v1660
    %v1757 = vpack.c.b16 %v1697, %v1693
    %v1758 = vpack.c.b16 %v1698, %v1694
    %v1759 = vpack.c.b16 %v1699, %v1695
    %v1760 = vpack.c.b16 %v1700, %v1696
    %v1761 = vpack.c.b16 %v1705, %v1701
    %v1762 = vpack.c.b16 %v1706, %v1702
    %v1763 = vpack.c.b16 %v1707, %v1703
    %v1764 = vpack.c.b16 %v1708, %v1704
    %v1765 = vpack.c.b16 %v1713, %v1709
    %v1766 = vpack.c.b16 %v1714, %v1710
    %v1767 = vpack.c.b16 %v1715, %v1711
    %v1768 = vpack.c.b16 %v1716, %v1712
    %v1769 = vpack.c.b16 %v1721, %v1717
    %v1770 = vpack.c.b16 %v1722, %v1718
    %v1771 = vpack.c.b16 %v1723, %v1719
    %v1772 = vpack.c.b16 %v1724, %v1720
    %v1773 = vpack.c.b16 %v1729, %v1725
    %v1774 = vpack.c.b16 %v1730, %v1726
    %v1775 = vpack.c.b16 %v1731, %v1727
    %v1776 = vpack.c.b16 %v1732, %v1728
    %v1777 = vpack.c.b16 %v1737, %v1733
    %v1778 = vpack.c.b16 %v1738, %v1734
    %v1779 = vpack.c.b16 %v1739, %v1735
    %v1780 = vpack.c.b16 %v1740, %v1736
    %v1781 = vpack.c.b16 %v1745, %v1741
    %v1782 = vpack.c.b16 %v1746, %v1742
    %v1783 = vpack.c.b16 %v1747, %v1743
    %v1784 = vpack.c.b16 %v1748, %v1744
    %v1785 = vpack.c.b16 %v1753, %v1749
    %v1786 = vpack.c.b16 %v1754, %v1750
    %v1787 = vpack.c.b16 %v1755, %v1751
    %v1788 = vpack.c.b16 %v1756, %v1752
    %1821 = vmatprep.subr.bf16.mxu0 %v1758
    %1822 = vmatpush1.bf16.msra.mxu0 %v1757
    %1823 = vmatprep.subr.bf16.mxu0 %v1762
    %1824 = vmatpush1.bf16.msra.mxu0 %v1761
    %1825 = vmatprep.subr.bf16.mxu0 %v1766
    %1826 = vmatpush1.bf16.msra.mxu0 %v1765
    %1827 = vmatprep.subr.bf16.mxu0 %v1770
    %1828 = vmatpush1.bf16.msra.mxu0 %v1769
    %1829 = vmatprep.subr.bf16.mxu0 %v1774
    %1830 = vmatpush1.bf16.msra.mxu0 %v1773
    %1831 = vmatprep.subr.bf16.mxu0 %v1778
    %1832 = vmatpush1.bf16.msra.mxu0 %v1777
    %1833 = vmatprep.subr.bf16.mxu0 %v1782
    %1834 = vmatpush1.bf16.msra.mxu0 %v1781
    %1835 = vmatprep.subr.bf16.mxu0 %v1786
    %1836 = vmatpush1.bf16.msra.mxu0 %v1785
    %1837 = vmatprep.subr.bf16.mxu0 0
    %1838 = vmatpush1.bf16.msra.mxu0 0
    %1839 = vmatprep.subr.bf16.mxu0 0
    %1840 = vmatpush1.bf16.msra.mxu0 0
    %1841 = vmatprep.subr.bf16.mxu0 0
    %1842 = vmatpush1.bf16.msra.mxu0 0
    %1843 = vmatprep.subr.bf16.mxu0 0
    %1844 = vmatpush1.bf16.msra.mxu0 0
    %1845 = vmatprep.subr.bf16.mxu0 0
    %1846 = vmatpush1.bf16.msra.mxu0 0
    %1847 = vmatprep.subr.bf16.mxu0 0
    %1848 = vmatpush1.bf16.msra.mxu0 0
    %1849 = vmatprep.subr.bf16.mxu0 0
    %1850 = vmatpush1.bf16.msra.mxu0 0
    %1851 = vmatprep.subr.bf16.mxu0 0
    %1852 = vmatpush1.bf16.msra.mxu0 0
    %1853 = vmatprep.mubr.bf16.mxu0 0
    %1854 = vmatmul.mubr.bf16.gmra.mrb[0].mxu0 %v1628
    %v1855 = vpop.f32.mrb[0].mxu0
    %v1856 = vadd.f32 0.0, %v1855
    %v1857 = vpop.f32.mrb[0].mxu0
    %v1858 = vadd.f32 0.0, %v1857
    %v1859 = vpop.f32.mrb[0].mxu0
    %v1860 = vpop.f32.mrb[0].mxu0
    %1861 = vdwg.mxu0
    %1862 = vmatprep.subr.bf16.mxu0 %v1760
    %1863 = vmatpush1.bf16.msra.mxu0 %v1759
    %1864 = vmatprep.subr.bf16.mxu0 %v1764
    %1865 = vmatpush1.bf16.msra.mxu0 %v1763
    %1866 = vmatprep.subr.bf16.mxu0 %v1768
    %1867 = vmatpush1.bf16.msra.mxu0 %v1767
    %1868 = vmatprep.subr.bf16.mxu0 %v1772
    %1869 = vmatpush1.bf16.msra.mxu0 %v1771
    %1870 = vmatprep.subr.bf16.mxu0 %v1776
    %1871 = vmatpush1.bf16.msra.mxu0 %v1775
    %1872 = vmatprep.subr.bf16.mxu0 %v1780
    %1873 = vmatpush1.bf16.msra.mxu0 %v1779
    %1874 = vmatprep.subr.bf16.mxu0 %v1784
    %1875 = vmatpush1.bf16.msra.mxu0 %v1783
    %1876 = vmatprep.subr.bf16.mxu0 %v1788
    %1877 = vmatpush1.bf16.msra.mxu0 %v1787
    %1878 = vmatprep.subr.bf16.mxu0 0
    %1879 = vmatpush1.bf16.msra.mxu0 0
    %1880 = vmatprep.subr.bf16.mxu0 0
    %1881 = vmatpush1.bf16.msra.mxu0 0
    %1882 = vmatprep.subr.bf16.mxu0 0
    %1883 = vmatpush1.bf16.msra.mxu0 0
    %1884 = vmatprep.subr.bf16.mxu0 0
    %1885 = vmatpush1.bf16.msra.mxu0 0
    %1886 = vmatprep.subr.bf16.mxu0 0
    %1887 = vmatpush1.bf16.msra.mxu0 0
    %1888 = vmatprep.subr.bf16.mxu0 0
    %1889 = vmatpush1.bf16.msra.mxu0 0
    %1890 = vmatprep.subr.bf16.mxu0 0
    %1891 = vmatpush1.bf16.msra.mxu0 0
    %1892 = vmatprep.subr.bf16.mxu0 0
    %1893 = vmatpush1.bf16.msra.mxu0 0
    %1894 = vmatprep.mubr.bf16.mxu0 0
    %1895 = vmatmul.mubr.bf16.gmra.mrb[0].mxu0 %v1628
    %v1896 = vpop.f32.mrb[0].mxu0
    %v1897 = vadd.f32 0.0, %v1896
    %v1898 = vpop.f32.mrb[0].mxu0
    %v1899 = vadd.f32 0.0, %v1898
    %v1900 = vpop.f32.mrb[0].mxu0
    %v1901 = vpop.f32.mrb[0].mxu0
    %1902 = vdwg.mxu0
    %v1907 = vrot.slane %v1856, 6
    %v1908 = vrot.slane %v1858, 6
    %v1909 = vrot.slane %v1897, 6
    %v1910 = vrot.slane %v1899, 6
    %v1915 = vadd.f32 %v1624, %v1907
    %v1916 = vadd.f32 %v1625, %v1908
    %v1917 = vadd.f32 %v1626, %v1909
    %v1918 = vadd.f32 %v1627, %v1910
    %v1919 = vmul.f32 %v1915, 0.5
    %v1920 = vtanh.pop %v1919
    %v1921 = vmul.f32 %v1920, 0.5
    %v1922 = vadd.f32 %v1921, 0.5
    %v1923 = vmul.f32 %v1916, 0.5
    %v1924 = vtanh.pop %v1923
    %v1925 = vmul.f32 %v1924, 0.5
    %v1926 = vadd.f32 %v1925, 0.5
    %v1927 = vtanh.pop %v1917
    %v1928 = vmul.f32 %v1918, 0.5
    %v1929 = vtanh.pop %v1928
    %v1930 = vmul.f32 %v1929, 0.5
    %v1931 = vadd.f32 %v1930, 0.5
    %v1933 = vrot.slane %v1623, 6
    %v1935 = vmul.f32 %v1926, %v1933
    %v1936 = vmul.f32 %v1922, %v1927
    %v1937 = vadd.f32 %v1935, %v1936
    %v1938 = vtanh.pop %v1937
    %v1939 = vmul.f32 %v1931, %v1938
    %1940 = vst [vmem:[#allocation3 - $0x2] sm:$0xc] %v1937
    %1941 = vst [vmem:[#allocation2 - $0x2] sm:$0xc] %v1939
    %1942 = vst [vmem:[#allocation9 + $0x8] sm:$0xc] %v1939
    %v1943 = vld [vmem:[#allocation2] sm:$0x3]
    %v1944 = vld [vmem:[#allocation3] sm:$0x3]
    %v1945 = vld [vmem:[#allocation4 + $0x20] sm:$0x30]
    %v1946 = vld [vmem:[#allocation4 + $0x28] sm:$0x30]
    %v1947 = vld [vmem:[#allocation4 + $0x30] sm:$0x30]
    %v1948 = vld [vmem:[#allocation4 + $0x38] sm:$0x30]
    %v1949 = vpack.c.bf16 %v1943, %v1943
    %v1950 = vld [vmem:[#allocation7] sm:$0xff]
    %v1951 = vld [vmem:[#allocation7 + $0x8] sm:$0xff]
    %v1952 = vld [vmem:[#allocation7 + $0x10] sm:$0xff]
    %v1953 = vld [vmem:[#allocation7 + $0x18] sm:$0xff]
    %v1954 = vld [vmem:[#allocation7 + $0x20] sm:$0xff]
    %v1955 = vld [vmem:[#allocation7 + $0x28] sm:$0xff]
    %v1956 = vld [vmem:[#allocation7 + $0x30] sm:$0xff]
    %v1957 = vld [vmem:[#allocation7 + $0x38] sm:$0xff]
    %v1958 = vld [vmem:[#allocation7 + $0x40] sm:$0xff]
    %v1959 = vld [vmem:[#allocation7 + $0x48] sm:$0xff]
    %v1960 = vld [vmem:[#allocation7 + $0x50] sm:$0xff]
    %v1961 = vld [vmem:[#allocation7 + $0x58] sm:$0xff]
    %v1962 = vld [vmem:[#allocation7 + $0x60] sm:$0xff]
    %v1963 = vld [vmem:[#allocation7 + $0x68] sm:$0xff]
    %v1964 = vld [vmem:[#allocation7 + $0x70] sm:$0xff]
    %v1965 = vld [vmem:[#allocation7 + $0x78] sm:$0xff]
    %v1966 = vld [vmem:[#allocation7 + $0x80] sm:$0xff]
    %v1967 = vld [vmem:[#allocation7 + $0x88] sm:$0xff]
    %v1968 = vld [vmem:[#allocation7 + $0x90] sm:$0xff]
    %v1969 = vld [vmem:[#allocation7 + $0x98] sm:$0xff]
    %v1970 = vld [vmem:[#allocation7 + $0xa0] sm:$0xff]
    %v1971 = vld [vmem:[#allocation7 + $0xa8] sm:$0xff]
    %v1972 = vld [vmem:[#allocation7 + $0xb0] sm:$0xff]
    %v1973 = vld [vmem:[#allocation7 + $0xb8] sm:$0xff]
    %v1974 = vld [vmem:[#allocation7 + $0xc0] sm:$0xff]
    %v1975 = vld [vmem:[#allocation7 + $0xc8] sm:$0xff]
    %v1976 = vld [vmem:[#allocation7 + $0xd0] sm:$0xff]
    %v1977 = vld [vmem:[#allocation7 + $0xd8] sm:$0xff]
    %v1978 = vld [vmem:[#allocation7 + $0xe0] sm:$0xff]
    %v1979 = vld [vmem:[#allocation7 + $0xe8] sm:$0xff]
    %v1980 = vld [vmem:[#allocation7 + $0xf0] sm:$0xff]
    %v1981 = vld [vmem:[#allocation7 + $0xf8] sm:$0xff]
    %v2014 = vunpack.c.l.b16 %v1950
    %v2015 = vunpack.c.h.b16 %v1950
    %v2016 = vunpack.c.l.b16 %v1951
    %v2017 = vunpack.c.h.b16 %v1951
    %v2018 = vunpack.c.l.b16 %v1952
    %v2019 = vunpack.c.h.b16 %v1952
    %v2020 = vunpack.c.l.b16 %v1953
    %v2021 = vunpack.c.h.b16 %v1953
    %v2022 = vunpack.c.l.b16 %v1954
    %v2023 = vunpack.c.h.b16 %v1954
    %v2024 = vunpack.c.l.b16 %v1955
    %v2025 = vunpack.c.h.b16 %v1955
    %v2026 = vunpack.c.l.b16 %v1956
    %v2027 = vunpack.c.h.b16 %v1956
    %v2028 = vunpack.c.l.b16 %v1957
    %v2029 = vunpack.c.h.b16 %v1957
    %v2030 = vunpack.c.l.b16 %v1958
    %v2031 = vunpack.c.h.b16 %v1958
    %v2032 = vunpack.c.l.b16 %v1959
    %v2033 = vunpack.c.h.b16 %v1959
    %v2034 = vunpack.c.l.b16 %v1960
    %v2035 = vunpack.c.h.b16 %v1960
    %v2036 = vunpack.c.l.b16 %v1961
    %v2037 = vunpack.c.h.b16 %v1961
    %v2038 = vunpack.c.l.b16 %v1962
    %v2039 = vunpack.c.h.b16 %v1962
    %v2040 = vunpack.c.l.b16 %v1963
    %v2041 = vunpack.c.h.b16 %v1963
    %v2042 = vunpack.c.l.b16 %v1964
    %v2043 = vunpack.c.h.b16 %v1964
    %v2044 = vunpack.c.l.b16 %v1965
    %v2045 = vunpack.c.h.b16 %v1965
    %v2046 = vunpack.c.l.b16 %v1966
    %v2047 = vunpack.c.h.b16 %v1966
    %v2048 = vunpack.c.l.b16 %v1967
    %v2049 = vunpack.c.h.b16 %v1967
    %v2050 = vunpack.c.l.b16 %v1968
    %v2051 = vunpack.c.h.b16 %v1968
    %v2052 = vunpack.c.l.b16 %v1969
    %v2053 = vunpack.c.h.b16 %v1969
    %v2054 = vunpack.c.l.b16 %v1970
    %v2055 = vunpack.c.h.b16 %v1970
    %v2056 = vunpack.c.l.b16 %v1971
    %v2057 = vunpack.c.h.b16 %v1971
    %v2058 = vunpack.c.l.b16 %v1972
    %v2059 = vunpack.c.h.b16 %v1972
    %v2060 = vunpack.c.l.b16 %v1973
    %v2061 = vunpack.c.h.b16 %v1973
    %v2062 = vunpack.c.l.b16 %v1974
    %v2063 = vunpack.c.h.b16 %v1974
    %v2064 = vunpack.c.l.b16 %v1975
    %v2065 = vunpack.c.h.b16 %v1975
    %v2066 = vunpack.c.l.b16 %v1976
    %v2067 = vunpack.c.h.b16 %v1976
    %v2068 = vunpack.c.l.b16 %v1977
    %v2069 = vunpack.c.h.b16 %v1977
    %v2070 = vunpack.c.l.b16 %v1978
    %v2071 = vunpack.c.h.b16 %v1978
    %v2072 = vunpack.c.l.b16 %v1979
    %v2073 = vunpack.c.h.b16 %v1979
    %v2074 = vunpack.c.l.b16 %v1980
    %v2075 = vunpack.c.h.b16 %v1980
    %v2076 = vunpack.c.l.b16 %v1981
    %v2077 = vunpack.c.h.b16 %v1981
    %v2078 = vpack.c.b16 %v2018, %v2014
    %v2079 = vpack.c.b16 %v2019, %v2015
    %v2080 = vpack.c.b16 %v2020, %v2016
    %v2081 = vpack.c.b16 %v2021, %v2017
    %v2082 = vpack.c.b16 %v2026, %v2022
    %v2083 = vpack.c.b16 %v2027, %v2023
    %v2084 = vpack.c.b16 %v2028, %v2024
    %v2085 = vpack.c.b16 %v2029, %v2025
    %v2086 = vpack.c.b16 %v2034, %v2030
    %v2087 = vpack.c.b16 %v2035, %v2031
    %v2088 = vpack.c.b16 %v2036, %v2032
    %v2089 = vpack.c.b16 %v2037, %v2033
    %v2090 = vpack.c.b16 %v2042, %v2038
    %v2091 = vpack.c.b16 %v2043, %v2039
    %v2092 = vpack.c.b16 %v2044, %v2040
    %v2093 = vpack.c.b16 %v2045, %v2041
    %v2094 = vpack.c.b16 %v2050, %v2046
    %v2095 = vpack.c.b16 %v2051, %v2047
    %v2096 = vpack.c.b16 %v2052, %v2048
    %v2097 = vpack.c.b16 %v2053, %v2049
    %v2098 = vpack.c.b16 %v2058, %v2054
    %v2099 = vpack.c.b16 %v2059, %v2055
    %v2100 = vpack.c.b16 %v2060, %v2056
    %v2101 = vpack.c.b16 %v2061, %v2057
    %v2102 = vpack.c.b16 %v2066, %v2062
    %v2103 = vpack.c.b16 %v2067, %v2063
    %v2104 = vpack.c.b16 %v2068, %v2064
    %v2105 = vpack.c.b16 %v2069, %v2065
    %v2106 = vpack.c.b16 %v2074, %v2070
    %v2107 = vpack.c.b16 %v2075, %v2071
    %v2108 = vpack.c.b16 %v2076, %v2072
    %v2109 = vpack.c.b16 %v2077, %v2073
    %2142 = vmatprep.subr.bf16.mxu0 %v2079
    %2143 = vmatpush1.bf16.msra.mxu0 %v2078
    %2144 = vmatprep.subr.bf16.mxu0 %v2083
    %2145 = vmatpush1.bf16.msra.mxu0 %v2082
    %2146 = vmatprep.subr.bf16.mxu0 %v2087
    %2147 = vmatpush1.bf16.msra.mxu0 %v2086
    %2148 = vmatprep.subr.bf16.mxu0 %v2091
    %2149 = vmatpush1.bf16.msra.mxu0 %v2090
    %2150 = vmatprep.subr.bf16.mxu0 %v2095
    %2151 = vmatpush1.bf16.msra.mxu0 %v2094
    %2152 = vmatprep.subr.bf16.mxu0 %v2099
    %2153 = vmatpush1.bf16.msra.mxu0 %v2098
    %2154 = vmatprep.subr.bf16.mxu0 %v2103
    %2155 = vmatpush1.bf16.msra.mxu0 %v2102
    %2156 = vmatprep.subr.bf16.mxu0 %v2107
    %2157 = vmatpush1.bf16.msra.mxu0 %v2106
    %2158 = vmatprep.subr.bf16.mxu0 0
    %2159 = vmatpush1.bf16.msra.mxu0 0
    %2160 = vmatprep.subr.bf16.mxu0 0
    %2161 = vmatpush1.bf16.msra.mxu0 0
    %2162 = vmatprep.subr.bf16.mxu0 0
    %2163 = vmatpush1.bf16.msra.mxu0 0
    %2164 = vmatprep.subr.bf16.mxu0 0
    %2165 = vmatpush1.bf16.msra.mxu0 0
    %2166 = vmatprep.subr.bf16.mxu0 0
    %2167 = vmatpush1.bf16.msra.mxu0 0
    %2168 = vmatprep.subr.bf16.mxu0 0
    %2169 = vmatpush1.bf16.msra.mxu0 0
    %2170 = vmatprep.subr.bf16.mxu0 0
    %2171 = vmatpush1.bf16.msra.mxu0 0
    %2172 = vmatprep.subr.bf16.mxu0 0
    %2173 = vmatpush1.bf16.msra.mxu0 0
    %2174 = vmatprep.mubr.bf16.mxu0 0
    %2175 = vmatmul.mubr.bf16.gmra.mrb[0].mxu0 %v1949
    %v2176 = vpop.f32.mrb[0].mxu0
    %v2177 = vadd.f32 0.0, %v2176
    %v2178 = vpop.f32.mrb[0].mxu0
    %v2179 = vadd.f32 0.0, %v2178
    %v2180 = vpop.f32.mrb[0].mxu0
    %v2181 = vpop.f32.mrb[0].mxu0
    %2182 = vdwg.mxu0
    %2183 = vmatprep.subr.bf16.mxu0 %v2081
    %2184 = vmatpush1.bf16.msra.mxu0 %v2080
    %2185 = vmatprep.subr.bf16.mxu0 %v2085
    %2186 = vmatpush1.bf16.msra.mxu0 %v2084
    %2187 = vmatprep.subr.bf16.mxu0 %v2089
    %2188 = vmatpush1.bf16.msra.mxu0 %v2088
    %2189 = vmatprep.subr.bf16.mxu0 %v2093
    %2190 = vmatpush1.bf16.msra.mxu0 %v2092
    %2191 = vmatprep.subr.bf16.mxu0 %v2097
    %2192 = vmatpush1.bf16.msra.mxu0 %v2096
    %2193 = vmatprep.subr.bf16.mxu0 %v2101
    %2194 = vmatpush1.bf16.msra.mxu0 %v2100
    %2195 = vmatprep.subr.bf16.mxu0 %v2105
    %2196 = vmatpush1.bf16.msra.mxu0 %v2104
    %2197 = vmatprep.subr.bf16.mxu0 %v2109
    %2198 = vmatpush1.bf16.msra.mxu0 %v2108
    %2199 = vmatprep.subr.bf16.mxu0 0
    %2200 = vmatpush1.bf16.msra.mxu0 0
    %2201 = vmatprep.subr.bf16.mxu0 0
    %2202 = vmatpush1.bf16.msra.mxu0 0
    %2203 = vmatprep.subr.bf16.mxu0 0
    %2204 = vmatpush1.bf16.msra.mxu0 0
    %2205 = vmatprep.subr.bf16.mxu0 0
    %2206 = vmatpush1.bf16.msra.mxu0 0
    %2207 = vmatprep.subr.bf16.mxu0 0
    %2208 = vmatpush1.bf16.msra.mxu0 0
    %2209 = vmatprep.subr.bf16.mxu0 0
    %2210 = vmatpush1.bf16.msra.mxu0 0
    %2211 = vmatprep.subr.bf16.mxu0 0
    %2212 = vmatpush1.bf16.msra.mxu0 0
    %2213 = vmatprep.subr.bf16.mxu0 0
    %2214 = vmatpush1.bf16.msra.mxu0 0
    %2215 = vmatprep.mubr.bf16.mxu0 0
    %2216 = vmatmul.mubr.bf16.gmra.mrb[0].mxu0 %v1949
    %v2217 = vpop.f32.mrb[0].mxu0
    %v2218 = vadd.f32 0.0, %v2217
    %v2219 = vpop.f32.mrb[0].mxu0
    %v2220 = vadd.f32 0.0, %v2219
    %v2221 = vpop.f32.mrb[0].mxu0
    %v2222 = vpop.f32.mrb[0].mxu0
    %2223 = vdwg.mxu0
    %v2228 = vrot.slane %v2177, 4
    %v2229 = vrot.slane %v2179, 4
    %v2230 = vrot.slane %v2218, 4
    %v2231 = vrot.slane %v2220, 4
    %v2236 = vadd.f32 %v1945, %v2228
    %v2237 = vadd.f32 %v1946, %v2229
    %v2238 = vadd.f32 %v1947, %v2230
    %v2239 = vadd.f32 %v1948, %v2231
    %v2240 = vmul.f32 %v2236, 0.5
    %v2241 = vtanh.pop %v2240
    %v2242 = vmul.f32 %v2241, 0.5
    %v2243 = vadd.f32 %v2242, 0.5
    %v2244 = vmul.f32 %v2237, 0.5
    %v2245 = vtanh.pop %v2244
    %v2246 = vmul.f32 %v2245, 0.5
    %v2247 = vadd.f32 %v2246, 0.5
    %v2248 = vtanh.pop %v2238
    %v2249 = vmul.f32 %v2239, 0.5
    %v2250 = vtanh.pop %v2249
    %v2251 = vmul.f32 %v2250, 0.5
    %v2252 = vadd.f32 %v2251, 0.5
    %v2254 = vrot.slane %v1944, 4
    %v2256 = vmul.f32 %v2247, %v2254
    %v2257 = vmul.f32 %v2243, %v2248
    %v2258 = vadd.f32 %v2256, %v2257
    %v2259 = vtanh.pop %v2258
    %v2260 = vmul.f32 %v2252, %v2259
    %2261 = vst [vmem:[#allocation3 - $0x4] sm:$0x30] %v2258
    %2262 = vst [vmem:[#allocation2 - $0x4] sm:$0x30] %v2260
    %2263 = vst [vmem:[#allocation9 + $0x8] sm:$0x30] %v2260
    %v2264 = vld [vmem:[#allocation2] sm:$0x3]
    %v2265 = vld [vmem:[#allocation3] sm:$0x3]
    %v2266 = vld [vmem:[#allocation4 + $0x20] sm:$0xc0]
    %v2267 = vld [vmem:[#allocation4 + $0x28] sm:$0xc0]
    %v2268 = vld [vmem:[#allocation4 + $0x30] sm:$0xc0]
    %v2269 = vld [vmem:[#allocation4 + $0x38] sm:$0xc0]
    %v2270 = vpack.c.bf16 %v2264, %v2264
    %v2271 = vld [vmem:[#allocation7] sm:$0xff]
    %v2272 = vld [vmem:[#allocation7 + $0x8] sm:$0xff]
    %v2273 = vld [vmem:[#allocation7 + $0x10] sm:$0xff]
    %v2274 = vld [vmem:[#allocation7 + $0x18] sm:$0xff]
    %v2275 = vld [vmem:[#allocation7 + $0x20] sm:$0xff]
    %v2276 = vld [vmem:[#allocation7 + $0x28] sm:$0xff]
    %v2277 = vld [vmem:[#allocation7 + $0x30] sm:$0xff]
    %v2278 = vld [vmem:[#allocation7 + $0x38] sm:$0xff]
    %v2279 = vld [vmem:[#allocation7 + $0x40] sm:$0xff]
    %v2280 = vld [vmem:[#allocation7 + $0x48] sm:$0xff]
    %v2281 = vld [vmem:[#allocation7 + $0x50] sm:$0xff]
    %v2282 = vld [vmem:[#allocation7 + $0x58] sm:$0xff]
    %v2283 = vld [vmem:[#allocation7 + $0x60] sm:$0xff]
    %v2284 = vld [vmem:[#allocation7 + $0x68] sm:$0xff]
    %v2285 = vld [vmem:[#allocation7 + $0x70] sm:$0xff]
    %v2286 = vld [vmem:[#allocation7 + $0x78] sm:$0xff]
    %v2287 = vld [vmem:[#allocation7 + $0x80] sm:$0xff]
    %v2288 = vld [vmem:[#allocation7 + $0x88] sm:$0xff]
    %v2289 = vld [vmem:[#allocation7 + $0x90] sm:$0xff]
    %v2290 = vld [vmem:[#allocation7 + $0x98] sm:$0xff]
    %v2291 = vld [vmem:[#allocation7 + $0xa0] sm:$0xff]
    %v2292 = vld [vmem:[#allocation7 + $0xa8] sm:$0xff]
    %v2293 = vld [vmem:[#allocation7 + $0xb0] sm:$0xff]
    %v2294 = vld [vmem:[#allocation7 + $0xb8] sm:$0xff]
    %v2295 = vld [vmem:[#allocation7 + $0xc0] sm:$0xff]
    %v2296 = vld [vmem:[#allocation7 + $0xc8] sm:$0xff]
    %v2297 = vld [vmem:[#allocation7 + $0xd0] sm:$0xff]
    %v2298 = vld [vmem:[#allocation7 + $0xd8] sm:$0xff]
    %v2299 = vld [vmem:[#allocation7 + $0xe0] sm:$0xff]
    %v2300 = vld [vmem:[#allocation7 + $0xe8] sm:$0xff]
    %v2301 = vld [vmem:[#allocation7 + $0xf0] sm:$0xff]
    %v2302 = vld [vmem:[#allocation7 + $0xf8] sm:$0xff]
    %v2335 = vunpack.c.l.b16 %v2271
    %v2336 = vunpack.c.h.b16 %v2271
    %v2337 = vunpack.c.l.b16 %v2272
    %v2338 = vunpack.c.h.b16 %v2272
    %v2339 = vunpack.c.l.b16 %v2273
    %v2340 = vunpack.c.h.b16 %v2273
    %v2341 = vunpack.c.l.b16 %v2274
    %v2342 = vunpack.c.h.b16 %v2274
    %v2343 = vunpack.c.l.b16 %v2275
    %v2344 = vunpack.c.h.b16 %v2275
    %v2345 = vunpack.c.l.b16 %v2276
    %v2346 = vunpack.c.h.b16 %v2276
    %v2347 = vunpack.c.l.b16 %v2277
    %v2348 = vunpack.c.h.b16 %v2277
    %v2349 = vunpack.c.l.b16 %v2278
    %v2350 = vunpack.c.h.b16 %v2278
    %v2351 = vunpack.c.l.b16 %v2279
    %v2352 = vunpack.c.h.b16 %v2279
    %v2353 = vunpack.c.l.b16 %v2280
    %v2354 = vunpack.c.h.b16 %v2280
    %v2355 = vunpack.c.l.b16 %v2281
    %v2356 = vunpack.c.h.b16 %v2281
    %v2357 = vunpack.c.l.b16 %v2282
    %v2358 = vunpack.c.h.b16 %v2282
    %v2359 = vunpack.c.l.b16 %v2283
    %v2360 = vunpack.c.h.b16 %v2283
    %v2361 = vunpack.c.l.b16 %v2284
    %v2362 = vunpack.c.h.b16 %v2284
    %v2363 = vunpack.c.l.b16 %v2285
    %v2364 = vunpack.c.h.b16 %v2285
    %v2365 = vunpack.c.l.b16 %v2286
    %v2366 = vunpack.c.h.b16 %v2286
    %v2367 = vunpack.c.l.b16 %v2287
    %v2368 = vunpack.c.h.b16 %v2287
    %v2369 = vunpack.c.l.b16 %v2288
    %v2370 = vunpack.c.h.b16 %v2288
    %v2371 = vunpack.c.l.b16 %v2289
    %v2372 = vunpack.c.h.b16 %v2289
    %v2373 = vunpack.c.l.b16 %v2290
    %v2374 = vunpack.c.h.b16 %v2290
    %v2375 = vunpack.c.l.b16 %v2291
    %v2376 = vunpack.c.h.b16 %v2291
    %v2377 = vunpack.c.l.b16 %v2292
    %v2378 = vunpack.c.h.b16 %v2292
    %v2379 = vunpack.c.l.b16 %v2293
    %v2380 = vunpack.c.h.b16 %v2293
    %v2381 = vunpack.c.l.b16 %v2294
    %v2382 = vunpack.c.h.b16 %v2294
    %v2383 = vunpack.c.l.b16 %v2295
    %v2384 = vunpack.c.h.b16 %v2295
    %v2385 = vunpack.c.l.b16 %v2296
    %v2386 = vunpack.c.h.b16 %v2296
    %v2387 = vunpack.c.l.b16 %v2297
    %v2388 = vunpack.c.h.b16 %v2297
    %v2389 = vunpack.c.l.b16 %v2298
    %v2390 = vunpack.c.h.b16 %v2298
    %v2391 = vunpack.c.l.b16 %v2299
    %v2392 = vunpack.c.h.b16 %v2299
    %v2393 = vunpack.c.l.b16 %v2300
    %v2394 = vunpack.c.h.b16 %v2300
    %v2395 = vunpack.c.l.b16 %v2301
    %v2396 = vunpack.c.h.b16 %v2301
    %v2397 = vunpack.c.l.b16 %v2302
    %v2398 = vunpack.c.h.b16 %v2302
    %v2399 = vpack.c.b16 %v2339, %v2335
    %v2400 = vpack.c.b16 %v2340, %v2336
    %v2401 = vpack.c.b16 %v2341, %v2337
    %v2402 = vpack.c.b16 %v2342, %v2338
    %v2403 = vpack.c.b16 %v2347, %v2343
    %v2404 = vpack.c.b16 %v2348, %v2344
    %v2405 = vpack.c.b16 %v2349, %v2345
    %v2406 = vpack.c.b16 %v2350, %v2346
    %v2407 = vpack.c.b16 %v2355, %v2351
    %v2408 = vpack.c.b16 %v2356, %v2352
    %v2409 = vpack.c.b16 %v2357, %v2353
    %v2410 = vpack.c.b16 %v2358, %v2354
    %v2411 = vpack.c.b16 %v2363, %v2359
    %v2412 = vpack.c.b16 %v2364, %v2360
    %v2413 = vpack.c.b16 %v2365, %v2361
    %v2414 = vpack.c.b16 %v2366, %v2362
    %v2415 = vpack.c.b16 %v2371, %v2367
    %v2416 = vpack.c.b16 %v2372, %v2368
    %v2417 = vpack.c.b16 %v2373, %v2369
    %v2418 = vpack.c.b16 %v2374, %v2370
    %v2419 = vpack.c.b16 %v2379, %v2375
    %v2420 = vpack.c.b16 %v2380, %v2376
    %v2421 = vpack.c.b16 %v2381, %v2377
    %v2422 = vpack.c.b16 %v2382, %v2378
    %v2423 = vpack.c.b16 %v2387, %v2383
    %v2424 = vpack.c.b16 %v2388, %v2384
    %v2425 = vpack.c.b16 %v2389, %v2385
    %v2426 = vpack.c.b16 %v2390, %v2386
    %v2427 = vpack.c.b16 %v2395, %v2391
    %v2428 = vpack.c.b16 %v2396, %v2392
    %v2429 = vpack.c.b16 %v2397, %v2393
    %v2430 = vpack.c.b16 %v2398, %v2394
    %2463 = vmatprep.subr.bf16.mxu0 %v2400
    %2464 = vmatpush1.bf16.msra.mxu0 %v2399
    %2465 = vmatprep.subr.bf16.mxu0 %v2404
    %2466 = vmatpush1.bf16.msra.mxu0 %v2403
    %2467 = vmatprep.subr.bf16.mxu0 %v2408
    %2468 = vmatpush1.bf16.msra.mxu0 %v2407
    %2469 = vmatprep.subr.bf16.mxu0 %v2412
    %2470 = vmatpush1.bf16.msra.mxu0 %v2411
    %2471 = vmatprep.subr.bf16.mxu0 %v2416
    %2472 = vmatpush1.bf16.msra.mxu0 %v2415
    %2473 = vmatprep.subr.bf16.mxu0 %v2420
    %2474 = vmatpush1.bf16.msra.mxu0 %v2419
    %2475 = vmatprep.subr.bf16.mxu0 %v2424
    %2476 = vmatpush1.bf16.msra.mxu0 %v2423
    %2477 = vmatprep.subr.bf16.mxu0 %v2428
    %2478 = vmatpush1.bf16.msra.mxu0 %v2427
    %2479 = vmatprep.subr.bf16.mxu0 0
    %2480 = vmatpush1.bf16.msra.mxu0 0
    %2481 = vmatprep.subr.bf16.mxu0 0
    %2482 = vmatpush1.bf16.msra.mxu0 0
    %2483 = vmatprep.subr.bf16.mxu0 0
    %2484 = vmatpush1.bf16.msra.mxu0 0
    %2485 = vmatprep.subr.bf16.mxu0 0
    %2486 = vmatpush1.bf16.msra.mxu0 0
    %2487 = vmatprep.subr.bf16.mxu0 0
    %2488 = vmatpush1.bf16.msra.mxu0 0
    %2489 = vmatprep.subr.bf16.mxu0 0
    %2490 = vmatpush1.bf16.msra.mxu0 0
    %2491 = vmatprep.subr.bf16.mxu0 0
    %2492 = vmatpush1.bf16.msra.mxu0 0
    %2493 = vmatprep.subr.bf16.mxu0 0
    %2494 = vmatpush1.bf16.msra.mxu0 0
    %2495 = vmatprep.mubr.bf16.mxu0 0
    %2496 = vmatmul.mubr.bf16.gmra.mrb[0].mxu0 %v2270
    %v2497 = vpop.f32.mrb[0].mxu0
    %v2498 = vadd.f32 0.0, %v2497
    %v2499 = vpop.f32.mrb[0].mxu0
    %v2500 = vadd.f32 0.0, %v2499
    %v2501 = vpop.f32.mrb[0].mxu0
    %v2502 = vpop.f32.mrb[0].mxu0
    %2503 = vdwg.mxu0
    %2504 = vmatprep.subr.bf16.mxu0 %v2402
    %2505 = vmatpush1.bf16.msra.mxu0 %v2401
    %2506 = vmatprep.subr.bf16.mxu0 %v2406
    %2507 = vmatpush1.bf16.msra.mxu0 %v2405
    %2508 = vmatprep.subr.bf16.mxu0 %v2410
    %2509 = vmatpush1.bf16.msra.mxu0 %v2409
    %2510 = vmatprep.subr.bf16.mxu0 %v2414
    %2511 = vmatpush1.bf16.msra.mxu0 %v2413
    %2512 = vmatprep.subr.bf16.mxu0 %v2418
    %2513 = vmatpush1.bf16.msra.mxu0 %v2417
    %2514 = vmatprep.subr.bf16.mxu0 %v2422
    %2515 = vmatpush1.bf16.msra.mxu0 %v2421
    %2516 = vmatprep.subr.bf16.mxu0 %v2426
    %2517 = vmatpush1.bf16.msra.mxu0 %v2425
    %2518 = vmatprep.subr.bf16.mxu0 %v2430
    %2519 = vmatpush1.bf16.msra.mxu0 %v2429
    %2520 = vmatprep.subr.bf16.mxu0 0
    %2521 = vmatpush1.bf16.msra.mxu0 0
    %2522 = vmatprep.subr.bf16.mxu0 0
    %2523 = vmatpush1.bf16.msra.mxu0 0
    %2524 = vmatprep.subr.bf16.mxu0 0
    %2525 = vmatpush1.bf16.msra.mxu0 0
    %2526 = vmatprep.subr.bf16.mxu0 0
    %2527 = vmatpush1.bf16.msra.mxu0 0
    %2528 = vmatprep.subr.bf16.mxu0 0
    %2529 = vmatpush1.bf16.msra.mxu0 0
    %2530 = vmatprep.subr.bf16.mxu0 0
    %2531 = vmatpush1.bf16.msra.mxu0 0
    %2532 = vmatprep.subr.bf16.mxu0 0
    %2533 = vmatpush1.bf16.msra.mxu0 0
    %2534 = vmatprep.subr.bf16.mxu0 0
    %2535 = vmatpush1.bf16.msra.mxu0 0
    %2536 = vmatprep.mubr.bf16.mxu0 0
    %2537 = vmatmul.mubr.bf16.gmra.mrb[0].mxu0 %v2270
    %v2538 = vpop.f32.mrb[0].mxu0
    %v2539 = vadd.f32 0.0, %v2538
    %v2540 = vpop.f32.mrb[0].mxu0
    %v2541 = vadd.f32 0.0, %v2540
    %v2542 = vpop.f32.mrb[0].mxu0
    %v2543 = vpop.f32.mrb[0].mxu0
    %2544 = vdwg.mxu0
    %v2549 = vrot.slane %v2498, 2
    %v2550 = vrot.slane %v2500, 2
    %v2551 = vrot.slane %v2539, 2
    %v2552 = vrot.slane %v2541, 2
    %v2557 = vadd.f32 %v2266, %v2549
    %v2558 = vadd.f32 %v2267, %v2550
    %v2559 = vadd.f32 %v2268, %v2551
    %v2560 = vadd.f32 %v2269, %v2552
    %v2561 = vmul.f32 %v2557, 0.5
    %v2562 = vtanh.pop %v2561
    %v2563 = vmul.f32 %v2562, 0.5
    %v2564 = vadd.f32 %v2563, 0.5
    %v2565 = vmul.f32 %v2558, 0.5
    %v2566 = vtanh.pop %v2565
    %v2567 = vmul.f32 %v2566, 0.5
    %v2568 = vadd.f32 %v2567, 0.5
    %v2569 = vtanh.pop %v2559
    %v2570 = vmul.f32 %v2560, 0.5
    %v2571 = vtanh.pop %v2570
    %v2572 = vmul.f32 %v2571, 0.5
    %v2573 = vadd.f32 %v2572, 0.5
    %v2575 = vrot.slane %v2265, 2
    %v2577 = vmul.f32 %v2568, %v2575
    %v2578 = vmul.f32 %v2564, %v2569
    %v2579 = vadd.f32 %v2577, %v2578
    %v2580 = vtanh.pop %v2579
    %v2581 = vmul.f32 %v2573, %v2580
    %2582 = vst [vmem:[#allocation3 - $0x6] sm:$0xc0] %v2579
    %2583 = vst [vmem:[#allocation2 - $0x6] sm:$0xc0] %v2581
    %2584 = vst [vmem:[#allocation9 + $0x8] sm:$0xc0] %v2581
    // Predicated region
    $region22: #{tpu_custom_call.1} parent=1 // pred_check
      _
    $region23: #{tpu_custom_call.1} parent=1 // pred_check_branch
      %2586 = sbr.rel (0) target = $region25
    $region24: #{tpu_custom_call.1} parent=1 // pred_region
      %s2588 = ssub.s32 256, 256
      %2589 = vsyncadd [#allocation6], %s2588
      %s2590 = sshll.u32 [#allocation9], 4
      %s2591 = int_to_ptr.vmem [resolvable:$true] %s2590
      %2596 = dma.vmem_to_hbm [thread:$0]  %s2591, 256, %s2, [#allocation6], 128, 128, 8
    $region25: #{tpu_custom_call.1} parent=1 // pred_fallthru
      _
    // Predicated region
    $region26: #{tpu_custom_call.1} parent=1 // pred_check
      _
    $region27: #{tpu_custom_call.1} parent=1 // pred_check_branch
      %2598 = sbr.rel (0) target = $region29
    $region28: #{tpu_custom_call.1} parent=1 // pred_region
      %2599 = dma.done [#allocation6], 256
    $region29: #{tpu_custom_call.1} parent=1 // pred_fallthru
      _
    %2600 = vsyncpa [#allocation5], 1
    %2601 = vsyncpa [#allocation8], 1
    %2602 = vsyncpa [#allocation6], 1

</llo_original>
